<compile_context>
chip_gen: v5e
topology: v5e:2x2
jax: 0.10.0
libtpu: 0.0.40
codegen_flags: <defaults>
</compile_context>

<pallas_src>
import functools
import math

import jax
import jax.numpy as jnp
from jax.experimental import pallas as pl
from jax.experimental.pallas import tpu as pltpu

_ISSUE_UNROLL = 8  # static unroll of the per-row DMA issue loop


def _embedding_gather_kernel(ids_ref, table_ref, out_ref, row_buf, sem, *, tm, scale):
    # ids_ref   : (n_pad,)    int32 token ids in SMEM (scalar prefetch)
    # table_ref : (V, D)      embedding table: VMEM-resident block (small) or
    #                         raw HBM ref via memory_space=pl.ANY (large)
    # out_ref   : (tm, D)     output tile in VMEM (auto-pipelined writeback)
    # row_buf   : (2, tm, D)  gather scratch, double-buffered across grid steps
    # sem       : (2,)        one DMA semaphore per scratch slot
    i = pl.program_id(0)
    slot = i & 1

    def issue_tile(tile_idx, dst_slot):
        base = tile_idx * tm

        @pl.loop(0, tm // _ISSUE_UNROLL)
        def _issue(u):
            t0 = u * _ISSUE_UNROLL
            for j in range(_ISSUE_UNROLL):  # static partial unroll
                t = t0 + j
                tok = ids_ref[base + t]
                pltpu.make_async_copy(
                    table_ref.at[pl.ds(tok, 1), :],
                    row_buf.at[dst_slot, pl.ds(t, 1), :],
                    sem.at[dst_slot],
                ).start()

    # Prime the pipeline: tile 0 -> slot 0 on the first step only.
    @pl.when(i == 0)
    def _():
        issue_tile(0, 0)

    # Prefetch the next tile's rows into the other slot; overlaps with this
    # tile's wait + scale/store and the output writeback DMA.
    @pl.when(i + 1 < pl.num_programs(0))
    def _():
        issue_tile(i + 1, 1 - slot)

    # Single aggregate wait for all tm row copies of this tile: DMA semaphores
    # count bytes, and tm row copies of (1, D) equal one (tm, D) descriptor.
    pltpu.make_async_copy(row_buf.at[slot], row_buf.at[slot], sem.at[slot]).wait()

    # Fused VPU pass: apply sqrt(d_model) and store to the lane-dense out tile.
    out_ref[...] = (row_buf[slot] * scale).astype(out_ref.dtype)


def _round_up(n, m):
    return ((n + m - 1) // m) * m


def _sublane_multiple(dtype):
    # 8 rows for 4-byte dtypes, 16 for 2-byte, 32 for 1-byte.
    return max(8, 32 // jnp.dtype(dtype).itemsize)


def embeddings_forward(x, table, *, d_model=None, tm=None, resident=None,
                       target_tile_bytes=2 << 20,
                       resident_table_limit_bytes=8 << 20):
    """x: (B, S) integer ids; table: (V, D). Returns (B, S, D) = table[x] * sqrt(d_model)."""
    B, S = x.shape
    V, D = table.shape
    n_tok = B * S
    scale = math.sqrt(D if d_model is None else d_model)
    itemsize = jnp.dtype(table.dtype).itemsize
    sub = _sublane_multiple(table.dtype)

    # Keep the output last dim lane-dense: pad table columns to a multiple of
    # 128 only if needed (no-op for typical d_model).
    Dp = _round_up(D, 128)
    table_k = table if Dp == D else jnp.pad(table, ((0, 0), (0, Dp - D)))

    # Byte-targeted token tile (~target_tile_bytes of output per grid step),
    # rounded to the dtype sublane multiple and clamped for tiny inputs.
    if tm is None:
        tm = max(sub, min(2048, target_tile_bytes // (Dp * itemsize)))
    tm = _round_up(min(tm, _round_up(n_tok, sub)), sub)

    n_tiles = pl.cdiv(n_tok, tm)
    n_pad = n_tiles * tm

    ids = x.reshape(-1).astype(jnp.int32)
    if n_pad != n_tok:
        ids = jnp.pad(ids, (0, n_pad - n_tok))  # pad with id 0 (a valid row)

    table_bytes = V * Dp * itemsize
    if resident is None:
        resident = table_bytes <= resident_table_limit_bytes
    if resident:
        # Constant index_map -> table is DMA'd into VMEM once and stays
        # resident across the grid; row gathers become local VMEM->VMEM DMAs.
        table_spec = pl.BlockSpec((V, Dp), lambda i, ids_ref: (0, 0))
        table_vmem = 2 * table_bytes  # budget for Pallas double-buffering
    else:
        table_spec = pl.BlockSpec(memory_space=pl.ANY)  # table stays in HBM
        table_vmem = 0

    tile_bytes = tm * Dp * itemsize
    # 2x gather scratch + 2x pipelined output block (+ resident table) + slack.
    vmem_budget = 4 * tile_bytes + table_vmem + (4 << 20)
    vmem_budget = int(min(max(vmem_budget, 16 << 20), 48 << 20))

    out_flat = pl.pallas_call(
        functools.partial(_embedding_gather_kernel, tm=tm, scale=scale),
        out_shape=jax.ShapeDtypeStruct((n_tok, Dp), table.dtype),
        grid_spec=pltpu.PrefetchScalarGridSpec(
            num_scalar_prefetch=1,                 # ids -> SMEM
            grid=(n_tiles,),
            in_specs=[table_spec],
            out_specs=pl.BlockSpec((tm, Dp), lambda i, ids_ref: (i, 0)),
            scratch_shapes=[
                pltpu.VMEM((2, tm, Dp), table.dtype),
                pltpu.SemaphoreType.DMA((2,)),
            ],
        ),
        compiler_params=pltpu.CompilerParams(
            # "arbitrary": the cross-step prefetch requires step i+1 to run next
            # on the same core (megacore-splitting a "parallel" axis could leave
            # a dangling prefetch at a core boundary).
            dimension_semantics=("arbitrary",),
            vmem_limit_bytes=vmem_budget,
        ),
    )(ids, table_k)

    out = out_flat if Dp == D else out_flat[:, :D]
    return out.reshape(B, S, D)


if __name__ == "__main__":
    key = jax.random.PRNGKey(0)
    k_tab, k_ids, k_ids2 = jax.random.split(key, 3)

    B, S = 2, 8            # batch, sequence length
    V, D = 64, 128         # vocab size, d_model (D=128 -> lane-dense output)

    # nn.Embedding default init: N(0, 1)
    table = jax.random.normal(k_tab, (V, D), dtype=jnp.float32)
    x = jax.random.randint(k_ids, (B, S), 0, V, dtype=jnp.int32)

    # Small table -> VMEM-resident fast path.
    out = embeddings_forward(x, table)
    out = jax.block_until_ready(out)
    ref = table[x] * math.sqrt(D)
    assert out.shape == (B, S, D)
    assert jnp.allclose(out, ref, atol=1e-5, rtol=1e-5)

    # Also exercise the HBM-gather path with multiple tiles, the cross-step
    # double buffer, and a ragged (partial) last output block.
    B2, S2 = 2, 72         # 144 tokens; tm=64 -> 3 tiles, 16-row tail
    x2 = jax.random.randint(k_ids2, (B2, S2), 0, V, dtype=jnp.int32)
    out2 = embeddings_forward(x2, table, tm=64, resident=False)
    out2 = jax.block_until_ready(out2)
    ref2 = table[x2] * math.sqrt(D)
    assert out2.shape == (B2, S2, D)
    assert jnp.allclose(out2, ref2, atol=1e-5, rtol=1e-5)

    print("KERNEL_OK")
</pallas_src>

<mosaic_0001>
module attributes {stable_mosaic.version = 11 : i64} {
  func.func @_embedding_gather_kernel(%arg0: i32, %arg1: memref<16xi32, #tpu.memory_space<smem>>, %arg2: memref<64x128xf32, #tpu.memory_space<vmem>>, %arg3: memref<16x128xf32, #tpu.memory_space<vmem>>, %arg4: memref<2x16x128xf32, #tpu.memory_space<vmem>>, %arg5: memref<2x!tpu.dma_semaphore, #tpu.memory_space<semaphore_mem>>) attributes {dimension_semantics = [#tpu.dimension_semantics<arbitrary>], iteration_bounds = array<i64: 1>, scalar_prefetch = 1 : i64, scratch_operands = 2 : i64, tpu.core_type = #tpu.core_type<tc>, window_params = [{pipeline_mode = #tpu.pipeline_mode<synchronous>, transform_indices = @transform_0, window_bounds = array<i64: 64, 128>}, {transform_indices = @transform_1, window_bounds = array<i64: 16, 128>}]} {
    %c1_i32 = arith.constant 1 : i32
    %0 = arith.andi %arg0, %c1_i32 : i32
    %c0_i32 = arith.constant 0 : i32
    %1 = arith.cmpi eq, %arg0, %c0_i32 : i32
    %2 = arith.extui %1 : i1 to i32
    %c0_i32_0 = arith.constant 0 : i32
    %3 = arith.cmpi ne, %2, %c0_i32_0 : i32
    scf.if %3 {
      %c0_i32_11 = arith.constant 0 : i32
      %c2_i32 = arith.constant 2 : i32
      %20 = arith.addi %c0_i32_11, %c2_i32 : i32
      %c1_i32_12 = arith.constant 1 : i32
      scf.for %arg6 = %c0_i32_11 to %20 step %c1_i32_12  : i32 {
        %c1_i32_14 = arith.constant 1 : i32
        %21 = arith.muli %arg6, %c1_i32_14 : i32
        %c0_i32_15 = arith.constant 0 : i32
        %22 = arith.addi %c0_i32_15, %21 : i32
        %c8_i32 = arith.constant 8 : i32
        %23 = arith.muli %22, %c8_i32 : i32
        %c0_i32_16 = arith.constant 0 : i32
        %24 = arith.addi %23, %c0_i32_16 : i32
        %c0_i32_17 = arith.constant 0 : i32
        %25 = arith.addi %c0_i32_17, %24 : i32
        %26 = arith.index_cast %25 : i32 to index
        %27 = memref.load %arg1[%26] : memref<16xi32, #tpu.memory_space<smem>>
        %c0_i32_18 = arith.constant 0 : i32
        %c0_i32_19 = arith.constant 0 : i32
        %c0_i32_20 = arith.constant 0 : i32
        %28 = tpu.memref_slice %arg2[%27, %c0_i32_20] : memref<64x128xf32, #tpu.memory_space<vmem>> -> memref<1x128xf32, #tpu.memory_space<vmem>>
        %c0_i32_21 = arith.constant 0 : i32
        %29 = tpu.memref_slice %arg4[%c0_i32_18, %24, %c0_i32_21] : memref<2x16x128xf32, #tpu.memory_space<vmem>> -> memref<1x1x128xf32, #tpu.memory_space<vmem>>
        %30 = tpu.memref_squeeze %29 : memref<1x1x128xf32, #tpu.memory_space<vmem>> -> memref<1x128xf32, #tpu.memory_space<vmem>>
        %31 = tpu.memref_slice %arg5[%c0_i32_19] : memref<2x!tpu.dma_semaphore, #tpu.memory_space<semaphore_mem>> -> memref<1x!tpu.dma_semaphore, #tpu.memory_space<semaphore_mem>>
        %32 = tpu.memref_squeeze %31 : memref<1x!tpu.dma_semaphore, #tpu.memory_space<semaphore_mem>> -> memref<!tpu.dma_semaphore, #tpu.memory_space<semaphore_mem>>
        tpu.enqueue_dma source(%28 : memref<1x128xf32, #tpu.memory_space<vmem>>) target(%30 : memref<1x128xf32, #tpu.memory_space<vmem>>) target_semaphore(%32 : memref<!tpu.dma_semaphore, #tpu.memory_space<semaphore_mem>>)
        %c1_i32_22 = arith.constant 1 : i32
        %33 = arith.addi %23, %c1_i32_22 : i32
        %c0_i32_23 = arith.constant 0 : i32
        %34 = arith.addi %c0_i32_23, %33 : i32
        %35 = arith.index_cast %34 : i32 to index
        %36 = memref.load %arg1[%35] : memref<16xi32, #tpu.memory_space<smem>>
        %c0_i32_24 = arith.constant 0 : i32
        %c0_i32_25 = arith.constant 0 : i32
        %c0_i32_26 = arith.constant 0 : i32
        %37 = tpu.memref_slice %arg2[%36, %c0_i32_26] : memref<64x128xf32, #tpu.memory_space<vmem>> -> memref<1x128xf32, #tpu.memory_space<vmem>>
        %c0_i32_27 = arith.constant 0 : i32
        %38 = tpu.memref_slice %arg4[%c0_i32_24, %33, %c0_i32_27] : memref<2x16x128xf32, #tpu.memory_space<vmem>> -> memref<1x1x128xf32, #tpu.memory_space<vmem>>
        %39 = tpu.memref_squeeze %38 : memref<1x1x128xf32, #tpu.memory_space<vmem>> -> memref<1x128xf32, #tpu.memory_space<vmem>>
        %40 = tpu.memref_slice %arg5[%c0_i32_25] : memref<2x!tpu.dma_semaphore, #tpu.memory_space<semaphore_mem>> -> memref<1x!tpu.dma_semaphore, #tpu.memory_space<semaphore_mem>>
        %41 = tpu.memref_squeeze %40 : memref<1x!tpu.dma_semaphore, #tpu.memory_space<semaphore_mem>> -> memref<!tpu.dma_semaphore, #tpu.memory_space<semaphore_mem>>
        tpu.enqueue_dma source(%37 : memref<1x128xf32, #tpu.memory_space<vmem>>) target(%39 : memref<1x128xf32, #tpu.memory_space<vmem>>) target_semaphore(%41 : memref<!tpu.dma_semaphore, #tpu.memory_space<semaphore_mem>>)
        %c2_i32_28 = arith.constant 2 : i32
        %42 = arith.addi %23, %c2_i32_28 : i32
        %c0_i32_29 = arith.constant 0 : i32
        %43 = arith.addi %c0_i32_29, %42 : i32
        %44 = arith.index_cast %43 : i32 to index
        %45 = memref.load %arg1[%44] : memref<16xi32, #tpu.memory_space<smem>>
        %c0_i32_30 = arith.constant 0 : i32
        %c0_i32_31 = arith.constant 0 : i32
        %c0_i32_32 = arith.constant 0 : i32
        %46 = tpu.memref_slice %arg2[%45, %c0_i32_32] : memref<64x128xf32, #tpu.memory_space<vmem>> -> memref<1x128xf32, #tpu.memory_space<vmem>>
        %c0_i32_33 = arith.constant 0 : i32
        %47 = tpu.memref_slice %arg4[%c0_i32_30, %42, %c0_i32_33] : memref<2x16x128xf32, #tpu.memory_space<vmem>> -> memref<1x1x128xf32, #tpu.memory_space<vmem>>
        %48 = tpu.memref_squeeze %47 : memref<1x1x128xf32, #tpu.memory_space<vmem>> -> memref<1x128xf32, #tpu.memory_space<vmem>>
        %49 = tpu.memref_slice %arg5[%c0_i32_31] : memref<2x!tpu.dma_semaphore, #tpu.memory_space<semaphore_mem>> -> memref<1x!tpu.dma_semaphore, #tpu.memory_space<semaphore_mem>>
        %50 = tpu.memref_squeeze %49 : memref<1x!tpu.dma_semaphore, #tpu.memory_space<semaphore_mem>> -> memref<!tpu.dma_semaphore, #tpu.memory_space<semaphore_mem>>
        tpu.enqueue_dma source(%46 : memref<1x128xf32, #tpu.memory_space<vmem>>) target(%48 : memref<1x128xf32, #tpu.memory_space<vmem>>) target_semaphore(%50 : memref<!tpu.dma_semaphore, #tpu.memory_space<semaphore_mem>>)
        %c3_i32 = arith.constant 3 : i32
        %51 = arith.addi %23, %c3_i32 : i32
        %c0_i32_34 = arith.constant 0 : i32
        %52 = arith.addi %c0_i32_34, %51 : i32
        %53 = arith.index_cast %52 : i32 to index
        %54 = memref.load %arg1[%53] : memref<16xi32, #tpu.memory_space<smem>>
        %c0_i32_35 = arith.constant 0 : i32
        %c0_i32_36 = arith.constant 0 : i32
        %c0_i32_37 = arith.constant 0 : i32
        %55 = tpu.memref_slice %arg2[%54, %c0_i32_37] : memref<64x128xf32, #tpu.memory_space<vmem>> -> memref<1x128xf32, #tpu.memory_space<vmem>>
        %c0_i32_38 = arith.constant 0 : i32
        %56 = tpu.memref_slice %arg4[%c0_i32_35, %51, %c0_i32_38] : memref<2x16x128xf32, #tpu.memory_space<vmem>> -> memref<1x1x128xf32, #tpu.memory_space<vmem>>
        %57 = tpu.memref_squeeze %56 : memref<1x1x128xf32, #tpu.memory_space<vmem>> -> memref<1x128xf32, #tpu.memory_space<vmem>>
        %58 = tpu.memref_slice %arg5[%c0_i32_36] : memref<2x!tpu.dma_semaphore, #tpu.memory_space<semaphore_mem>> -> memref<1x!tpu.dma_semaphore, #tpu.memory_space<semaphore_mem>>
        %59 = tpu.memref_squeeze %58 : memref<1x!tpu.dma_semaphore, #tpu.memory_space<semaphore_mem>> -> memref<!tpu.dma_semaphore, #tpu.memory_space<semaphore_mem>>
        tpu.enqueue_dma source(%55 : memref<1x128xf32, #tpu.memory_space<vmem>>) target(%57 : memref<1x128xf32, #tpu.memory_space<vmem>>) target_semaphore(%59 : memref<!tpu.dma_semaphore, #tpu.memory_space<semaphore_mem>>)
        %c4_i32 = arith.constant 4 : i32
        %60 = arith.addi %23, %c4_i32 : i32
        %c0_i32_39 = arith.constant 0 : i32
        %61 = arith.addi %c0_i32_39, %60 : i32
        %62 = arith.index_cast %61 : i32 to index
        %63 = memref.load %arg1[%62] : memref<16xi32, #tpu.memory_space<smem>>
        %c0_i32_40 = arith.constant 0 : i32
        %c0_i32_41 = arith.constant 0 : i32
        %c0_i32_42 = arith.constant 0 : i32
        %64 = tpu.memref_slice %arg2[%63, %c0_i32_42] : memref<64x128xf32, #tpu.memory_space<vmem>> -> memref<1x128xf32, #tpu.memory_space<vmem>>
        %c0_i32_43 = arith.constant 0 : i32
        %65 = tpu.memref_slice %arg4[%c0_i32_40, %60, %c0_i32_43] : memref<2x16x128xf32, #tpu.memory_space<vmem>> -> memref<1x1x128xf32, #tpu.memory_space<vmem>>
        %66 = tpu.memref_squeeze %65 : memref<1x1x128xf32, #tpu.memory_space<vmem>> -> memref<1x128xf32, #tpu.memory_space<vmem>>
        %67 = tpu.memref_slice %arg5[%c0_i32_41] : memref<2x!tpu.dma_semaphore, #tpu.memory_space<semaphore_mem>> -> memref<1x!tpu.dma_semaphore, #tpu.memory_space<semaphore_mem>>
        %68 = tpu.memref_squeeze %67 : memref<1x!tpu.dma_semaphore, #tpu.memory_space<semaphore_mem>> -> memref<!tpu.dma_semaphore, #tpu.memory_space<semaphore_mem>>
        tpu.enqueue_dma source(%64 : memref<1x128xf32, #tpu.memory_space<vmem>>) target(%66 : memref<1x128xf32, #tpu.memory_space<vmem>>) target_semaphore(%68 : memref<!tpu.dma_semaphore, #tpu.memory_space<semaphore_mem>>)
        %c5_i32 = arith.constant 5 : i32
        %69 = arith.addi %23, %c5_i32 : i32
        %c0_i32_44 = arith.constant 0 : i32
        %70 = arith.addi %c0_i32_44, %69 : i32
        %71 = arith.index_cast %70 : i32 to index
        %72 = memref.load %arg1[%71] : memref<16xi32, #tpu.memory_space<smem>>
        %c0_i32_45 = arith.constant 0 : i32
        %c0_i32_46 = arith.constant 0 : i32
        %c0_i32_47 = arith.constant 0 : i32
        %73 = tpu.memref_slice %arg2[%72, %c0_i32_47] : memref<64x128xf32, #tpu.memory_space<vmem>> -> memref<1x128xf32, #tpu.memory_space<vmem>>
        %c0_i32_48 = arith.constant 0 : i32
        %74 = tpu.memref_slice %arg4[%c0_i32_45, %69, %c0_i32_48] : memref<2x16x128xf32, #tpu.memory_space<vmem>> -> memref<1x1x128xf32, #tpu.memory_space<vmem>>
        %75 = tpu.memref_squeeze %74 : memref<1x1x128xf32, #tpu.memory_space<vmem>> -> memref<1x128xf32, #tpu.memory_space<vmem>>
        %76 = tpu.memref_slice %arg5[%c0_i32_46] : memref<2x!tpu.dma_semaphore, #tpu.memory_space<semaphore_mem>> -> memref<1x!tpu.dma_semaphore, #tpu.memory_space<semaphore_mem>>
        %77 = tpu.memref_squeeze %76 : memref<1x!tpu.dma_semaphore, #tpu.memory_space<semaphore_mem>> -> memref<!tpu.dma_semaphore, #tpu.memory_space<semaphore_mem>>
        tpu.enqueue_dma source(%73 : memref<1x128xf32, #tpu.memory_space<vmem>>) target(%75 : memref<1x128xf32, #tpu.memory_space<vmem>>) target_semaphore(%77 : memref<!tpu.dma_semaphore, #tpu.memory_space<semaphore_mem>>)
        %c6_i32 = arith.constant 6 : i32
        %78 = arith.addi %23, %c6_i32 : i32
        %c0_i32_49 = arith.constant 0 : i32
        %79 = arith.addi %c0_i32_49, %78 : i32
        %80 = arith.index_cast %79 : i32 to index
        %81 = memref.load %arg1[%80] : memref<16xi32, #tpu.memory_space<smem>>
        %c0_i32_50 = arith.constant 0 : i32
        %c0_i32_51 = arith.constant 0 : i32
        %c0_i32_52 = arith.constant 0 : i32
        %82 = tpu.memref_slice %arg2[%81, %c0_i32_52] : memref<64x128xf32, #tpu.memory_space<vmem>> -> memref<1x128xf32, #tpu.memory_space<vmem>>
        %c0_i32_53 = arith.constant 0 : i32
        %83 = tpu.memref_slice %arg4[%c0_i32_50, %78, %c0_i32_53] : memref<2x16x128xf32, #tpu.memory_space<vmem>> -> memref<1x1x128xf32, #tpu.memory_space<vmem>>
        %84 = tpu.memref_squeeze %83 : memref<1x1x128xf32, #tpu.memory_space<vmem>> -> memref<1x128xf32, #tpu.memory_space<vmem>>
        %85 = tpu.memref_slice %arg5[%c0_i32_51] : memref<2x!tpu.dma_semaphore, #tpu.memory_space<semaphore_mem>> -> memref<1x!tpu.dma_semaphore, #tpu.memory_space<semaphore_mem>>
        %86 = tpu.memref_squeeze %85 : memref<1x!tpu.dma_semaphore, #tpu.memory_space<semaphore_mem>> -> memref<!tpu.dma_semaphore, #tpu.memory_space<semaphore_mem>>
        tpu.enqueue_dma source(%82 : memref<1x128xf32, #tpu.memory_space<vmem>>) target(%84 : memref<1x128xf32, #tpu.memory_space<vmem>>) target_semaphore(%86 : memref<!tpu.dma_semaphore, #tpu.memory_space<semaphore_mem>>)
        %c7_i32 = arith.constant 7 : i32
        %87 = arith.addi %23, %c7_i32 : i32
        %c0_i32_54 = arith.constant 0 : i32
        %88 = arith.addi %c0_i32_54, %87 : i32
        %89 = arith.index_cast %88 : i32 to index
        %90 = memref.load %arg1[%89] : memref<16xi32, #tpu.memory_space<smem>>
        %c0_i32_55 = arith.constant 0 : i32
        %c0_i32_56 = arith.constant 0 : i32
        %c0_i32_57 = arith.constant 0 : i32
        %91 = tpu.memref_slice %arg2[%90, %c0_i32_57] : memref<64x128xf32, #tpu.memory_space<vmem>> -> memref<1x128xf32, #tpu.memory_space<vmem>>
        %c0_i32_58 = arith.constant 0 : i32
        %92 = tpu.memref_slice %arg4[%c0_i32_55, %87, %c0_i32_58] : memref<2x16x128xf32, #tpu.memory_space<vmem>> -> memref<1x1x128xf32, #tpu.memory_space<vmem>>
        %93 = tpu.memref_squeeze %92 : memref<1x1x128xf32, #tpu.memory_space<vmem>> -> memref<1x128xf32, #tpu.memory_space<vmem>>
        %94 = tpu.memref_slice %arg5[%c0_i32_56] : memref<2x!tpu.dma_semaphore, #tpu.memory_space<semaphore_mem>> -> memref<1x!tpu.dma_semaphore, #tpu.memory_space<semaphore_mem>>
        %95 = tpu.memref_squeeze %94 : memref<1x!tpu.dma_semaphore, #tpu.memory_space<semaphore_mem>> -> memref<!tpu.dma_semaphore, #tpu.memory_space<semaphore_mem>>
        tpu.enqueue_dma source(%91 : memref<1x128xf32, #tpu.memory_space<vmem>>) target(%93 : memref<1x128xf32, #tpu.memory_space<vmem>>) target_semaphore(%95 : memref<!tpu.dma_semaphore, #tpu.memory_space<semaphore_mem>>)
      }
      %c2_i32_13 = arith.constant 2 : i32
    } else {
    }
    %c1_i32_1 = arith.constant 1 : i32
    %4 = arith.addi %arg0, %c1_i32_1 : i32
    %c1_i32_2 = arith.constant 1 : i32
    %5 = arith.cmpi slt, %4, %c1_i32_2 : i32
    %6 = arith.extui %5 : i1 to i32
    %c0_i32_3 = arith.constant 0 : i32
    %7 = arith.cmpi ne, %6, %c0_i32_3 : i32
    scf.if %7 {
      %c1_i32_11 = arith.constant 1 : i32
      %20 = arith.addi %arg0, %c1_i32_11 : i32
      %c1_i32_12 = arith.constant 1 : i32
      %21 = arith.subi %c1_i32_12, %0 : i32
      %c16_i32 = arith.constant 16 : i32
      %22 = arith.muli %20, %c16_i32 : i32
      %c0_i32_13 = arith.constant 0 : i32
      %c2_i32 = arith.constant 2 : i32
      %23 = arith.addi %c0_i32_13, %c2_i32 : i32
      %c1_i32_14 = arith.constant 1 : i32
      scf.for %arg6 = %c0_i32_13 to %23 step %c1_i32_14  : i32 {
        %c1_i32_16 = arith.constant 1 : i32
        %24 = arith.muli %arg6, %c1_i32_16 : i32
        %c0_i32_17 = arith.constant 0 : i32
        %25 = arith.addi %c0_i32_17, %24 : i32
        %c8_i32 = arith.constant 8 : i32
        %26 = arith.muli %25, %c8_i32 : i32
        %c0_i32_18 = arith.constant 0 : i32
        %27 = arith.addi %26, %c0_i32_18 : i32
        %28 = arith.addi %22, %27 : i32
        %29 = arith.index_cast %28 : i32 to index
        %30 = memref.load %arg1[%29] : memref<16xi32, #tpu.memory_space<smem>>
        %c0_i32_19 = arith.constant 0 : i32
        %31 = tpu.memref_slice %arg2[%30, %c0_i32_19] : memref<64x128xf32, #tpu.memory_space<vmem>> -> memref<1x128xf32, #tpu.memory_space<vmem>>
        %c0_i32_20 = arith.constant 0 : i32
        %32 = tpu.memref_slice %arg4[%21, %27, %c0_i32_20] : memref<2x16x128xf32, #tpu.memory_space<vmem>> -> memref<1x1x128xf32, #tpu.memory_space<vmem>>
        %33 = tpu.memref_squeeze %32 : memref<1x1x128xf32, #tpu.memory_space<vmem>> -> memref<1x128xf32, #tpu.memory_space<vmem>>
        %34 = tpu.memref_slice %arg5[%21] : memref<2x!tpu.dma_semaphore, #tpu.memory_space<semaphore_mem>> -> memref<1x!tpu.dma_semaphore, #tpu.memory_space<semaphore_mem>>
        %35 = tpu.memref_squeeze %34 : memref<1x!tpu.dma_semaphore, #tpu.memory_space<semaphore_mem>> -> memref<!tpu.dma_semaphore, #tpu.memory_space<semaphore_mem>>
        tpu.enqueue_dma source(%31 : memref<1x128xf32, #tpu.memory_space<vmem>>) target(%33 : memref<1x128xf32, #tpu.memory_space<vmem>>) target_semaphore(%35 : memref<!tpu.dma_semaphore, #tpu.memory_space<semaphore_mem>>)
        %c1_i32_21 = arith.constant 1 : i32
        %36 = arith.addi %26, %c1_i32_21 : i32
        %37 = arith.addi %22, %36 : i32
        %38 = arith.index_cast %37 : i32 to index
        %39 = memref.load %arg1[%38] : memref<16xi32, #tpu.memory_space<smem>>
        %c0_i32_22 = arith.constant 0 : i32
        %40 = tpu.memref_slice %arg2[%39, %c0_i32_22] : memref<64x128xf32, #tpu.memory_space<vmem>> -> memref<1x128xf32, #tpu.memory_space<vmem>>
        %c0_i32_23 = arith.constant 0 : i32
        %41 = tpu.memref_slice %arg4[%21, %36, %c0_i32_23] : memref<2x16x128xf32, #tpu.memory_space<vmem>> -> memref<1x1x128xf32, #tpu.memory_space<vmem>>
        %42 = tpu.memref_squeeze %41 : memref<1x1x128xf32, #tpu.memory_space<vmem>> -> memref<1x128xf32, #tpu.memory_space<vmem>>
        %43 = tpu.memref_slice %arg5[%21] : memref<2x!tpu.dma_semaphore, #tpu.memory_space<semaphore_mem>> -> memref<1x!tpu.dma_semaphore, #tpu.memory_space<semaphore_mem>>
        %44 = tpu.memref_squeeze %43 : memref<1x!tpu.dma_semaphore, #tpu.memory_space<semaphore_mem>> -> memref<!tpu.dma_semaphore, #tpu.memory_space<semaphore_mem>>
        tpu.enqueue_dma source(%40 : memref<1x128xf32, #tpu.memory_space<vmem>>) target(%42 : memref<1x128xf32, #tpu.memory_space<vmem>>) target_semaphore(%44 : memref<!tpu.dma_semaphore, #tpu.memory_space<semaphore_mem>>)
        %c2_i32_24 = arith.constant 2 : i32
        %45 = arith.addi %26, %c2_i32_24 : i32
        %46 = arith.addi %22, %45 : i32
        %47 = arith.index_cast %46 : i32 to index
        %48 = memref.load %arg1[%47] : memref<16xi32, #tpu.memory_space<smem>>
        %c0_i32_25 = arith.constant 0 : i32
        %49 = tpu.memref_slice %arg2[%48, %c0_i32_25] : memref<64x128xf32, #tpu.memory_space<vmem>> -> memref<1x128xf32, #tpu.memory_space<vmem>>
        %c0_i32_26 = arith.constant 0 : i32
        %50 = tpu.memref_slice %arg4[%21, %45, %c0_i32_26] : memref<2x16x128xf32, #tpu.memory_space<vmem>> -> memref<1x1x128xf32, #tpu.memory_space<vmem>>
        %51 = tpu.memref_squeeze %50 : memref<1x1x128xf32, #tpu.memory_space<vmem>> -> memref<1x128xf32, #tpu.memory_space<vmem>>
        %52 = tpu.memref_slice %arg5[%21] : memref<2x!tpu.dma_semaphore, #tpu.memory_space<semaphore_mem>> -> memref<1x!tpu.dma_semaphore, #tpu.memory_space<semaphore_mem>>
        %53 = tpu.memref_squeeze %52 : memref<1x!tpu.dma_semaphore, #tpu.memory_space<semaphore_mem>> -> memref<!tpu.dma_semaphore, #tpu.memory_space<semaphore_mem>>
        tpu.enqueue_dma source(%49 : memref<1x128xf32, #tpu.memory_space<vmem>>) target(%51 : memref<1x128xf32, #tpu.memory_space<vmem>>) target_semaphore(%53 : memref<!tpu.dma_semaphore, #tpu.memory_space<semaphore_mem>>)
        %c3_i32 = arith.constant 3 : i32
        %54 = arith.addi %26, %c3_i32 : i32
        %55 = arith.addi %22, %54 : i32
        %56 = arith.index_cast %55 : i32 to index
        %57 = memref.load %arg1[%56] : memref<16xi32, #tpu.memory_space<smem>>
        %c0_i32_27 = arith.constant 0 : i32
        %58 = tpu.memref_slice %arg2[%57, %c0_i32_27] : memref<64x128xf32, #tpu.memory_space<vmem>> -> memref<1x128xf32, #tpu.memory_space<vmem>>
        %c0_i32_28 = arith.constant 0 : i32
        %59 = tpu.memref_slice %arg4[%21, %54, %c0_i32_28] : memref<2x16x128xf32, #tpu.memory_space<vmem>> -> memref<1x1x128xf32, #tpu.memory_space<vmem>>
        %60 = tpu.memref_squeeze %59 : memref<1x1x128xf32, #tpu.memory_space<vmem>> -> memref<1x128xf32, #tpu.memory_space<vmem>>
        %61 = tpu.memref_slice %arg5[%21] : memref<2x!tpu.dma_semaphore, #tpu.memory_space<semaphore_mem>> -> memref<1x!tpu.dma_semaphore, #tpu.memory_space<semaphore_mem>>
        %62 = tpu.memref_squeeze %61 : memref<1x!tpu.dma_semaphore, #tpu.memory_space<semaphore_mem>> -> memref<!tpu.dma_semaphore, #tpu.memory_space<semaphore_mem>>
        tpu.enqueue_dma source(%58 : memref<1x128xf32, #tpu.memory_space<vmem>>) target(%60 : memref<1x128xf32, #tpu.memory_space<vmem>>) target_semaphore(%62 : memref<!tpu.dma_semaphore, #tpu.memory_space<semaphore_mem>>)
        %c4_i32 = arith.constant 4 : i32
        %63 = arith.addi %26, %c4_i32 : i32
        %64 = arith.addi %22, %63 : i32
        %65 = arith.index_cast %64 : i32 to index
        %66 = memref.load %arg1[%65] : memref<16xi32, #tpu.memory_space<smem>>
        %c0_i32_29 = arith.constant 0 : i32
        %67 = tpu.memref_slice %arg2[%66, %c0_i32_29] : memref<64x128xf32, #tpu.memory_space<vmem>> -> memref<1x128xf32, #tpu.memory_space<vmem>>
        %c0_i32_30 = arith.constant 0 : i32
        %68 = tpu.memref_slice %arg4[%21, %63, %c0_i32_30] : memref<2x16x128xf32, #tpu.memory_space<vmem>> -> memref<1x1x128xf32, #tpu.memory_space<vmem>>
        %69 = tpu.memref_squeeze %68 : memref<1x1x128xf32, #tpu.memory_space<vmem>> -> memref<1x128xf32, #tpu.memory_space<vmem>>
        %70 = tpu.memref_slice %arg5[%21] : memref<2x!tpu.dma_semaphore, #tpu.memory_space<semaphore_mem>> -> memref<1x!tpu.dma_semaphore, #tpu.memory_space<semaphore_mem>>
        %71 = tpu.memref_squeeze %70 : memref<1x!tpu.dma_semaphore, #tpu.memory_space<semaphore_mem>> -> memref<!tpu.dma_semaphore, #tpu.memory_space<semaphore_mem>>
        tpu.enqueue_dma source(%67 : memref<1x128xf32, #tpu.memory_space<vmem>>) target(%69 : memref<1x128xf32, #tpu.memory_space<vmem>>) target_semaphore(%71 : memref<!tpu.dma_semaphore, #tpu.memory_space<semaphore_mem>>)
        %c5_i32 = arith.constant 5 : i32
        %72 = arith.addi %26, %c5_i32 : i32
        %73 = arith.addi %22, %72 : i32
        %74 = arith.index_cast %73 : i32 to index
        %75 = memref.load %arg1[%74] : memref<16xi32, #tpu.memory_space<smem>>
        %c0_i32_31 = arith.constant 0 : i32
        %76 = tpu.memref_slice %arg2[%75, %c0_i32_31] : memref<64x128xf32, #tpu.memory_space<vmem>> -> memref<1x128xf32, #tpu.memory_space<vmem>>
        %c0_i32_32 = arith.constant 0 : i32
        %77 = tpu.memref_slice %arg4[%21, %72, %c0_i32_32] : memref<2x16x128xf32, #tpu.memory_space<vmem>> -> memref<1x1x128xf32, #tpu.memory_space<vmem>>
        %78 = tpu.memref_squeeze %77 : memref<1x1x128xf32, #tpu.memory_space<vmem>> -> memref<1x128xf32, #tpu.memory_space<vmem>>
        %79 = tpu.memref_slice %arg5[%21] : memref<2x!tpu.dma_semaphore, #tpu.memory_space<semaphore_mem>> -> memref<1x!tpu.dma_semaphore, #tpu.memory_space<semaphore_mem>>
        %80 = tpu.memref_squeeze %79 : memref<1x!tpu.dma_semaphore, #tpu.memory_space<semaphore_mem>> -> memref<!tpu.dma_semaphore, #tpu.memory_space<semaphore_mem>>
        tpu.enqueue_dma source(%76 : memref<1x128xf32, #tpu.memory_space<vmem>>) target(%78 : memref<1x128xf32, #tpu.memory_space<vmem>>) target_semaphore(%80 : memref<!tpu.dma_semaphore, #tpu.memory_space<semaphore_mem>>)
        %c6_i32 = arith.constant 6 : i32
        %81 = arith.addi %26, %c6_i32 : i32
        %82 = arith.addi %22, %81 : i32
        %83 = arith.index_cast %82 : i32 to index
        %84 = memref.load %arg1[%83] : memref<16xi32, #tpu.memory_space<smem>>
        %c0_i32_33 = arith.constant 0 : i32
        %85 = tpu.memref_slice %arg2[%84, %c0_i32_33] : memref<64x128xf32, #tpu.memory_space<vmem>> -> memref<1x128xf32, #tpu.memory_space<vmem>>
        %c0_i32_34 = arith.constant 0 : i32
        %86 = tpu.memref_slice %arg4[%21, %81, %c0_i32_34] : memref<2x16x128xf32, #tpu.memory_space<vmem>> -> memref<1x1x128xf32, #tpu.memory_space<vmem>>
        %87 = tpu.memref_squeeze %86 : memref<1x1x128xf32, #tpu.memory_space<vmem>> -> memref<1x128xf32, #tpu.memory_space<vmem>>
        %88 = tpu.memref_slice %arg5[%21] : memref<2x!tpu.dma_semaphore, #tpu.memory_space<semaphore_mem>> -> memref<1x!tpu.dma_semaphore, #tpu.memory_space<semaphore_mem>>
        %89 = tpu.memref_squeeze %88 : memref<1x!tpu.dma_semaphore, #tpu.memory_space<semaphore_mem>> -> memref<!tpu.dma_semaphore, #tpu.memory_space<semaphore_mem>>
        tpu.enqueue_dma source(%85 : memref<1x128xf32, #tpu.memory_space<vmem>>) target(%87 : memref<1x128xf32, #tpu.memory_space<vmem>>) target_semaphore(%89 : memref<!tpu.dma_semaphore, #tpu.memory_space<semaphore_mem>>)
        %c7_i32 = arith.constant 7 : i32
        %90 = arith.addi %26, %c7_i32 : i32
        %91 = arith.addi %22, %90 : i32
        %92 = arith.index_cast %91 : i32 to index
        %93 = memref.load %arg1[%92] : memref<16xi32, #tpu.memory_space<smem>>
        %c0_i32_35 = arith.constant 0 : i32
        %94 = tpu.memref_slice %arg2[%93, %c0_i32_35] : memref<64x128xf32, #tpu.memory_space<vmem>> -> memref<1x128xf32, #tpu.memory_space<vmem>>
        %c0_i32_36 = arith.constant 0 : i32
        %95 = tpu.memref_slice %arg4[%21, %90, %c0_i32_36] : memref<2x16x128xf32, #tpu.memory_space<vmem>> -> memref<1x1x128xf32, #tpu.memory_space<vmem>>
        %96 = tpu.memref_squeeze %95 : memref<1x1x128xf32, #tpu.memory_space<vmem>> -> memref<1x128xf32, #tpu.memory_space<vmem>>
        %97 = tpu.memref_slice %arg5[%21] : memref<2x!tpu.dma_semaphore, #tpu.memory_space<semaphore_mem>> -> memref<1x!tpu.dma_semaphore, #tpu.memory_space<semaphore_mem>>
        %98 = tpu.memref_squeeze %97 : memref<1x!tpu.dma_semaphore, #tpu.memory_space<semaphore_mem>> -> memref<!tpu.dma_semaphore, #tpu.memory_space<semaphore_mem>>
        tpu.enqueue_dma source(%94 : memref<1x128xf32, #tpu.memory_space<vmem>>) target(%96 : memref<1x128xf32, #tpu.memory_space<vmem>>) target_semaphore(%98 : memref<!tpu.dma_semaphore, #tpu.memory_space<semaphore_mem>>)
      }
      %c2_i32_15 = arith.constant 2 : i32
    } else {
    }
    %c0_i32_4 = arith.constant 0 : i32
    %c0_i32_5 = arith.constant 0 : i32
    %8 = tpu.memref_slice %arg4[%0, %c0_i32_4, %c0_i32_5] : memref<2x16x128xf32, #tpu.memory_space<vmem>> -> memref<1x16x128xf32, #tpu.memory_space<vmem>>
    %9 = tpu.memref_squeeze %8 : memref<1x16x128xf32, #tpu.memory_space<vmem>> -> memref<16x128xf32, #tpu.memory_space<vmem>>
    %c0_i32_6 = arith.constant 0 : i32
    %c0_i32_7 = arith.constant 0 : i32
    %10 = tpu.memref_slice %arg4[%0, %c0_i32_6, %c0_i32_7] : memref<2x16x128xf32, #tpu.memory_space<vmem>> -> memref<1x16x128xf32, #tpu.memory_space<vmem>>
    %11 = tpu.memref_squeeze %10 : memref<1x16x128xf32, #tpu.memory_space<vmem>> -> memref<16x128xf32, #tpu.memory_space<vmem>>
    %12 = tpu.memref_slice %arg5[%0] : memref<2x!tpu.dma_semaphore, #tpu.memory_space<semaphore_mem>> -> memref<1x!tpu.dma_semaphore, #tpu.memory_space<semaphore_mem>>
    %13 = tpu.memref_squeeze %12 : memref<1x!tpu.dma_semaphore, #tpu.memory_space<semaphore_mem>> -> memref<!tpu.dma_semaphore, #tpu.memory_space<semaphore_mem>>
    tpu.wait_dma2 semaphore(%13 : memref<!tpu.dma_semaphore, #tpu.memory_space<semaphore_mem>>) src(%9 : memref<16x128xf32, #tpu.memory_space<vmem>>) dst(%11 : memref<16x128xf32, #tpu.memory_space<vmem>>)
    %14 = arith.index_cast %0 : i32 to index
    %c0 = arith.constant 0 : index
    %c0_8 = arith.constant 0 : index
    %15 = vector.load %arg4[%14, %c0, %c0_8] : memref<2x16x128xf32, #tpu.memory_space<vmem>>, vector<1x16x128xf32>
    %16 = vector.shape_cast %15 : vector<1x16x128xf32> to vector<16x128xf32>
    %cst = arith.constant 11.3137083 : f32
    %17 = vector.broadcast %cst : f32 to vector<16x128xf32>
    %18 = arith.mulf %16, %17 : vector<16x128xf32>
    %c0_9 = arith.constant 0 : index
    %c0_10 = arith.constant 0 : index
    %19 = vector.load %arg3[%c0_9, %c0_10] : memref<16x128xf32, #tpu.memory_space<vmem>>, vector<16x128xf32>
    tpu.vector_store %arg3[%c0_9, %c0_10], %18 {strides = array<i32>} : memref<16x128xf32, #tpu.memory_space<vmem>>, vector<16x128xf32>,
    return
  }
  func.func @transform_0(%arg0: i32, %arg1: memref<16xi32, #tpu.memory_space<smem>>) -> (i32, i32) {
    %c0_i32 = arith.constant 0 : i32
    %c0_i32_0 = arith.constant 0 : i32
    %c0_i32_1 = arith.constant 0 : i32
    return %c0_i32, %c0_i32_0 : i32, i32
  }
  func.func @transform_1(%arg0: i32, %arg1: memref<16xi32, #tpu.memory_space<smem>>) -> (i32, i32) {
    %c0_i32 = arith.constant 0 : i32
    %c0_i32_0 = arith.constant 0 : i32
    return %arg0, %c0_i32 : i32, i32
  }
}

</mosaic_0001>

<llo_original>
// kernel: tpu_custom_call.1
$region0: #{tpu_custom_call.1}
  #allocation0 [shape = 'u32[]', space=smem, size = 0x4, offset = 0x4, fixed_abs, tag = 'smem constant byte address 0x4 - core index']
  #allocation1 [shape = 'u32[72,128]{1,0:T(1,128)}', space=vmem, size = 0x9000, scoped, tag = 'internal scratch']
  #allocation2 [shape = 'f32[2,16,128]{2,1,0:T(8,128)}', space=vmem, size = 0x4000, scoped, tag = 'scratch operand']
  #allocation3 [shape = 's32[2]{0}', space=sflag, size = 0x8, scoped, tag = 'scratch operand']
  #allocation4 [shape = 's32[1]{0}', space=sflag, size = 0x4, scoped, tag = 'scoped memory for tpu_custom_call.1']
  #allocation5 [shape = 'u8[512]{0}', space=smem, size = 0x200, scoped, tag = 'prefetched SMEM operand 0']
  #allocation10 [shape = 's32[]', space=sflag, size = 0x4, offset = 0, fixed_abs, tag = 'sflag constant byte address 0x0 - dummy sync flag']
  #allocation11 [shape = 's32[]', space=sflag, size = 0x4, offset = 0, fixed_abs, tag = 'sflag constant byte address 0x0 - dummy sync flag']
  #allocation12 [shape = 's32[]', space=sflag, size = 0x4, offset = 0, fixed_abs, tag = 'sflag constant byte address 0x0 - dummy sync flag']
  #allocation13 [shape = 's32[]', space=sflag, size = 0x4, offset = 0, fixed_abs, tag = 'sflag constant byte address 0x0 - dummy sync flag']
  #allocation14 [shape = 's32[]', space=sflag, size = 0x4, offset = 0, fixed_abs, tag = 'sflag constant byte address 0x0 - dummy sync flag']
  #allocation15 [shape = 's32[]', space=sflag, size = 0x4, offset = 0, fixed_abs, tag = 'sflag constant byte address 0x0 - dummy sync flag']
  #allocation16 [shape = 's32[]', space=sflag, size = 0x4, offset = 0, fixed_abs, tag = 'sflag constant byte address 0x0 - dummy sync flag']
  #allocation17 [shape = 's32[]', space=sflag, size = 0x4, offset = 0, fixed_abs, tag = 'sflag constant byte address 0x0 - dummy sync flag']
  #allocation18 [shape = 's32[]', space=sflag, size = 0x4, offset = 0, fixed_abs, tag = 'sflag constant byte address 0x0 - dummy sync flag']
  #allocation19 [shape = 's32[]', space=sflag, size = 0x4, offset = 0, fixed_abs, tag = 'sflag constant byte address 0x0 - dummy sync flag']
  #allocation20 [shape = 's32[]', space=sflag, size = 0x4, offset = 0, fixed_abs, tag = 'sflag constant byte address 0x0 - dummy sync flag']
  #allocation21 [shape = 's32[]', space=sflag, size = 0x4, offset = 0, fixed_abs, tag = 'sflag constant byte address 0x0 - dummy sync flag']
  #allocation22 [shape = 's32[]', space=sflag, size = 0x4, offset = 0, fixed_abs, tag = 'sflag constant byte address 0x0 - dummy sync flag']
  #allocation23 [shape = 's32[]', space=sflag, size = 0x4, offset = 0, fixed_abs, tag = 'sflag constant byte address 0x0 - dummy sync flag']
  #allocation24 [shape = 's32[]', space=sflag, size = 0x4, offset = 0, fixed_abs, tag = 'sflag constant byte address 0x0 - dummy sync flag']
  #allocation25 [shape = 's32[]', space=sflag, size = 0x4, offset = 0, fixed_abs, tag = 'sflag constant byte address 0x0 - dummy sync flag']
  %s0 = inlined_call_operand.hbm [shape: s32[16], index: 0, kind: input, shape index: {}]
  %s1 = inlined_call_operand.hbm [shape: f32[64,128], index: 1, kind: input, shape index: {}]
  %s2 = inlined_call_operand.hbm [shape: f32[16,128], index: 2, kind: output, shape index: {}]
  %s3 = sld [smem:[#allocation0]]
  $region520: #{tpu_custom_call.1} parent=0
    _
  %s5 = ssub.s32 1, %s3
  %s6 = scalar_select 0, %s5, %s3
  %s8 = sshll.u32 %s0, 4
  %s9 = int_to_ptr.hbm [resolvable:$true] %s8
  %11 = dma.hbm_to_smem %s9, 16, [#allocation5], [#allocation4]
  %13 = dma.done [#allocation4], 16
  %14 = sfence
  $region1: #{tpu_custom_call.1} parent=0
    #allocation6 [shape = 'u8[32768]{0}', space=vmem, size = 0x8000, scoped, tag = 'input window, operand 1, single buffered']
    #allocation7 [shape = 's32[1]{0}', space=sflag, size = 0x4, scoped, tag = 'scoped memory for tpu_custom_call.1']
    #allocation8 [shape = 's32[1]{0}', space=sflag, size = 0x4, scoped, tag = 'scoped memory for tpu_custom_call.1']
    #allocation9 [shape = 'u8[8192]{0}', space=vmem, size = 0x2000, scoped, tag = 'output window, operand 0, single buffered']
    %15 = vsyncpa [#allocation7], 0
    %16 = vsyncpa [#allocation8], 0
    // Predicated region
    $region2: #{tpu_custom_call.1} parent=1 // pred_check
      _
    $region3: #{tpu_custom_call.1} parent=1 // pred_check_branch
      %18 = sbr.rel (0) target = $region5
    $region4: #{tpu_custom_call.1} parent=1 // pred_region
      %20 = vsyncadd [#allocation7], 0
      %s21 = sshll.u32 %s1, 4
      %s22 = int_to_ptr.hbm [resolvable:$true] %s21
      %s23 = sshll.u32 [#allocation6], 4
      %s24 = int_to_ptr.vmem [resolvable:$true] %s23
      %29 = dma.hbm_to_vmem [thread:$0]  %s22, 1024, %s24, [#allocation7], 128, 128, 8
    $region5: #{tpu_custom_call.1} parent=1 // pred_fallthru
      _
    // Predicated region
    $region6: #{tpu_custom_call.1} parent=1 // pred_check
      _
    $region7: #{tpu_custom_call.1} parent=1 // pred_check_branch
      %31 = sbr.rel (0) target = $region9
    $region8: #{tpu_custom_call.1} parent=1 // pred_region
      %33 = dma.done [#allocation7], 1024
    $region9: #{tpu_custom_call.1} parent=1 // pred_fallthru
      _
    %s34 = sand.u32 0, 1
    %p35 = scmp.eq.s32.totalorder 0, 0
    // Predicated region
    $region10: #{tpu_custom_call.1} parent=1 // pred_check
      %p36 = pneg %p35
    $region11: #{tpu_custom_call.1} parent=1 // pred_check_branch
      %38 = sbr.rel (%p36) target = $region13
    $region12: #{tpu_custom_call.1} parent=1 // pred_region
      loop: start=0, step=1, limit=2
      $region14: #{tpu_custom_call.1} parent=12 // loop_pre_header
        _
      $region15: #{tpu_custom_call.1} parent=12 // loop_header
        %s40 = sphi 0, %s44
        %p41 = scmp.ge.s32.totalorder %s40, 2
      $region16: #{tpu_custom_call.1} parent=12 // loop_header_branch
        %43 = sbr.rel (%p41) target = $region20
      $region17: #{tpu_custom_call.1} parent=12 // loop_body
        %s45 = smul.u32 %s40, 8
        %s46 = sld [smem:[#allocation5 + %s45]]
        %s47 = scalar_lea.vmem [#allocation6], %s46
        %s48 = scalar_lea.vmem [#allocation2], %s45
        // Predicated region
        $region21: #{tpu_custom_call.1} parent=17 // pred_check
          _
        $region22: #{tpu_custom_call.1} parent=17 // pred_check_branch
          %50 = sbr.rel target = $region24
        $region23: #{tpu_custom_call.1} parent=17 // pred_region
          // Predicated region
          $region36: #{tpu_custom_call.1} parent=23 // pred_check
            _
          $region37: #{tpu_custom_call.1} parent=23 // pred_check_branch
            %66 = sbr.rel (0) target = $region39
          $region38: #{tpu_custom_call.1} parent=23 // pred_region
            %s68 = ssub.s32 2, 1
            loop: start=0, step=1, limit=1
            $region40: #{tpu_custom_call.1} parent=38 // loop_pre_header
              _
            $region41: #{tpu_custom_call.1} parent=38 // loop_header
              %s70 = sphi 0, %s74
              %p71 = scmp.ge.s32.totalorder %s70, 1
              %s75 = sphi %s47, %s47
              %s76 = sphi %s48, %s48
            $region42: #{tpu_custom_call.1} parent=38 // loop_header_branch
              %73 = sbr.rel (%p71) target = $region46
            $region43: #{tpu_custom_call.1} parent=38 // loop_body
              %v77 = vld [vmem:[%s75] sm:%s68]
              %78 = vst [vmem:[%s76] sm:%s68] %v77
            $region44: #{tpu_custom_call.1} parent=38 // loop_footer
              %s74 = sadd.s32 1, %s70
            $region45: #{tpu_custom_call.1} parent=38 // loop_footer_branch
              %69 = sbr.rel target = $region41
            $region46: #{tpu_custom_call.1} parent=38 // loop_exit
              _
          $region39: #{tpu_custom_call.1} parent=23 // pred_fallthru
            _
        $region24: #{tpu_custom_call.1} parent=17 // pred_fallthru
          _
        // Predicated region
        $region25: #{tpu_custom_call.1} parent=17 // pred_check
          _
        $region26: #{tpu_custom_call.1} parent=17 // pred_check_branch
          %52 = sbr.rel (0) target = $region28
        $region27: #{tpu_custom_call.1} parent=17 // pred_region
          %s54 = ssub.s32 2, 1
          loop: start=0, step=1, limit=1
          $region29: #{tpu_custom_call.1} parent=27 // loop_pre_header
            _
          $region30: #{tpu_custom_call.1} parent=27 // loop_header
            %s56 = sphi 0, %s60
            %p57 = scmp.ge.s32.totalorder %s56, 1
            %s61 = sphi %s47, %s47
            %s62 = sphi %s48, %s48
          $region31: #{tpu_custom_call.1} parent=27 // loop_header_branch
            %59 = sbr.rel (%p57) target = $region35
          $region32: #{tpu_custom_call.1} parent=27 // loop_body
            %v63 = vld [vmem:[%s61] sm:%s54]
            %64 = vst [vmem:[%s62] sm:%s54] %v63
          $region33: #{tpu_custom_call.1} parent=27 // loop_footer
            %s60 = sadd.s32 1, %s56
          $region34: #{tpu_custom_call.1} parent=27 // loop_footer_branch
            %55 = sbr.rel target = $region30
          $region35: #{tpu_custom_call.1} parent=27 // loop_exit
            _
        $region28: #{tpu_custom_call.1} parent=17 // pred_fallthru
          _
        // Predicated region
        $region47: #{tpu_custom_call.1} parent=17 // pred_check
          _
        $region48: #{tpu_custom_call.1} parent=17 // pred_check_branch
          %81 = sbr.rel (0) target = $region50
        $region49: #{tpu_custom_call.1} parent=17 // pred_region
          %82 = vsyncadd [#allocation3], 16
        $region50: #{tpu_custom_call.1} parent=17 // pred_fallthru
          _
        %s83 = sadd.s32 %s45, 1
        %s84 = sld [smem:[#allocation5 + %s83]]
        %s85 = scalar_lea.vmem [#allocation6], %s84
        %s86 = scalar_lea.vmem [#allocation2], %s83
        // Predicated region
        $region51: #{tpu_custom_call.1} parent=17 // pred_check
          _
        $region52: #{tpu_custom_call.1} parent=17 // pred_check_branch
          %88 = sbr.rel target = $region54
        $region53: #{tpu_custom_call.1} parent=17 // pred_region
          // Predicated region
          $region66: #{tpu_custom_call.1} parent=53 // pred_check
            _
          $region67: #{tpu_custom_call.1} parent=53 // pred_check_branch
            %104 = sbr.rel (0) target = $region69
          $region68: #{tpu_custom_call.1} parent=53 // pred_region
            %s106 = ssub.s32 2, 1
            loop: start=0, step=1, limit=1
            $region70: #{tpu_custom_call.1} parent=68 // loop_pre_header
              _
            $region71: #{tpu_custom_call.1} parent=68 // loop_header
              %s108 = sphi 0, %s112
              %p109 = scmp.ge.s32.totalorder %s108, 1
              %s113 = sphi %s85, %s85
              %s114 = sphi %s86, %s86
            $region72: #{tpu_custom_call.1} parent=68 // loop_header_branch
              %111 = sbr.rel (%p109) target = $region76
            $region73: #{tpu_custom_call.1} parent=68 // loop_body
              %v115 = vld [vmem:[%s113] sm:%s106]
              %116 = vst [vmem:[%s114] sm:%s106] %v115
            $region74: #{tpu_custom_call.1} parent=68 // loop_footer
              %s112 = sadd.s32 1, %s108
            $region75: #{tpu_custom_call.1} parent=68 // loop_footer_branch
              %107 = sbr.rel target = $region71
            $region76: #{tpu_custom_call.1} parent=68 // loop_exit
              _
          $region69: #{tpu_custom_call.1} parent=53 // pred_fallthru
            _
        $region54: #{tpu_custom_call.1} parent=17 // pred_fallthru
          _
        // Predicated region
        $region55: #{tpu_custom_call.1} parent=17 // pred_check
          _
        $region56: #{tpu_custom_call.1} parent=17 // pred_check_branch
          %90 = sbr.rel (0) target = $region58
        $region57: #{tpu_custom_call.1} parent=17 // pred_region
          %s92 = ssub.s32 2, 1
          loop: start=0, step=1, limit=1
          $region59: #{tpu_custom_call.1} parent=57 // loop_pre_header
            _
          $region60: #{tpu_custom_call.1} parent=57 // loop_header
            %s94 = sphi 0, %s98
            %p95 = scmp.ge.s32.totalorder %s94, 1
            %s99 = sphi %s85, %s85
            %s100 = sphi %s86, %s86
          $region61: #{tpu_custom_call.1} parent=57 // loop_header_branch
            %97 = sbr.rel (%p95) target = $region65
          $region62: #{tpu_custom_call.1} parent=57 // loop_body
            %v101 = vld [vmem:[%s99] sm:%s92]
            %102 = vst [vmem:[%s100] sm:%s92] %v101
          $region63: #{tpu_custom_call.1} parent=57 // loop_footer
            %s98 = sadd.s32 1, %s94
          $region64: #{tpu_custom_call.1} parent=57 // loop_footer_branch
            %93 = sbr.rel target = $region60
          $region65: #{tpu_custom_call.1} parent=57 // loop_exit
            _
        $region58: #{tpu_custom_call.1} parent=17 // pred_fallthru
          _
        // Predicated region
        $region77: #{tpu_custom_call.1} parent=17 // pred_check
          _
        $region78: #{tpu_custom_call.1} parent=17 // pred_check_branch
          %119 = sbr.rel (0) target = $region80
        $region79: #{tpu_custom_call.1} parent=17 // pred_region
          %120 = vsyncadd [#allocation3], 16
        $region80: #{tpu_custom_call.1} parent=17 // pred_fallthru
          _
        %s121 = sadd.s32 %s45, 2
        %s122 = sld [smem:[#allocation5 + %s121]]
        %s123 = scalar_lea.vmem [#allocation6], %s122
        %s124 = scalar_lea.vmem [#allocation2], %s121
        // Predicated region
        $region81: #{tpu_custom_call.1} parent=17 // pred_check
          _
        $region82: #{tpu_custom_call.1} parent=17 // pred_check_branch
          %126 = sbr.rel target = $region84
        $region83: #{tpu_custom_call.1} parent=17 // pred_region
          // Predicated region
          $region96: #{tpu_custom_call.1} parent=83 // pred_check
            _
          $region97: #{tpu_custom_call.1} parent=83 // pred_check_branch
            %142 = sbr.rel (0) target = $region99
          $region98: #{tpu_custom_call.1} parent=83 // pred_region
            %s144 = ssub.s32 2, 1
            loop: start=0, step=1, limit=1
            $region100: #{tpu_custom_call.1} parent=98 // loop_pre_header
              _
            $region101: #{tpu_custom_call.1} parent=98 // loop_header
              %s146 = sphi 0, %s150
              %p147 = scmp.ge.s32.totalorder %s146, 1
              %s151 = sphi %s123, %s123
              %s152 = sphi %s124, %s124
            $region102: #{tpu_custom_call.1} parent=98 // loop_header_branch
              %149 = sbr.rel (%p147) target = $region106
            $region103: #{tpu_custom_call.1} parent=98 // loop_body
              %v153 = vld [vmem:[%s151] sm:%s144]
              %154 = vst [vmem:[%s152] sm:%s144] %v153
            $region104: #{tpu_custom_call.1} parent=98 // loop_footer
              %s150 = sadd.s32 1, %s146
            $region105: #{tpu_custom_call.1} parent=98 // loop_footer_branch
              %145 = sbr.rel target = $region101
            $region106: #{tpu_custom_call.1} parent=98 // loop_exit
              _
          $region99: #{tpu_custom_call.1} parent=83 // pred_fallthru
            _
        $region84: #{tpu_custom_call.1} parent=17 // pred_fallthru
          _
        // Predicated region
        $region85: #{tpu_custom_call.1} parent=17 // pred_check
          _
        $region86: #{tpu_custom_call.1} parent=17 // pred_check_branch
          %128 = sbr.rel (0) target = $region88
        $region87: #{tpu_custom_call.1} parent=17 // pred_region
          %s130 = ssub.s32 2, 1
          loop: start=0, step=1, limit=1
          $region89: #{tpu_custom_call.1} parent=87 // loop_pre_header
            _
          $region90: #{tpu_custom_call.1} parent=87 // loop_header
            %s132 = sphi 0, %s136
            %p133 = scmp.ge.s32.totalorder %s132, 1
            %s137 = sphi %s123, %s123
            %s138 = sphi %s124, %s124
          $region91: #{tpu_custom_call.1} parent=87 // loop_header_branch
            %135 = sbr.rel (%p133) target = $region95
          $region92: #{tpu_custom_call.1} parent=87 // loop_body
            %v139 = vld [vmem:[%s137] sm:%s130]
            %140 = vst [vmem:[%s138] sm:%s130] %v139
          $region93: #{tpu_custom_call.1} parent=87 // loop_footer
            %s136 = sadd.s32 1, %s132
          $region94: #{tpu_custom_call.1} parent=87 // loop_footer_branch
            %131 = sbr.rel target = $region90
          $region95: #{tpu_custom_call.1} parent=87 // loop_exit
            _
        $region88: #{tpu_custom_call.1} parent=17 // pred_fallthru
          _
        // Predicated region
        $region107: #{tpu_custom_call.1} parent=17 // pred_check
          _
        $region108: #{tpu_custom_call.1} parent=17 // pred_check_branch
          %157 = sbr.rel (0) target = $region110
        $region109: #{tpu_custom_call.1} parent=17 // pred_region
          %158 = vsyncadd [#allocation3], 16
        $region110: #{tpu_custom_call.1} parent=17 // pred_fallthru
          _
        %s159 = sadd.s32 %s45, 3
        %s160 = sld [smem:[#allocation5 + %s159]]
        %s161 = scalar_lea.vmem [#allocation6], %s160
        %s162 = scalar_lea.vmem [#allocation2], %s159
        // Predicated region
        $region111: #{tpu_custom_call.1} parent=17 // pred_check
          _
        $region112: #{tpu_custom_call.1} parent=17 // pred_check_branch
          %164 = sbr.rel target = $region114
        $region113: #{tpu_custom_call.1} parent=17 // pred_region
          // Predicated region
          $region126: #{tpu_custom_call.1} parent=113 // pred_check
            _
          $region127: #{tpu_custom_call.1} parent=113 // pred_check_branch
            %180 = sbr.rel (0) target = $region129
          $region128: #{tpu_custom_call.1} parent=113 // pred_region
            %s182 = ssub.s32 2, 1
            loop: start=0, step=1, limit=1
            $region130: #{tpu_custom_call.1} parent=128 // loop_pre_header
              _
            $region131: #{tpu_custom_call.1} parent=128 // loop_header
              %s184 = sphi 0, %s188
              %p185 = scmp.ge.s32.totalorder %s184, 1
              %s189 = sphi %s161, %s161
              %s190 = sphi %s162, %s162
            $region132: #{tpu_custom_call.1} parent=128 // loop_header_branch
              %187 = sbr.rel (%p185) target = $region136
            $region133: #{tpu_custom_call.1} parent=128 // loop_body
              %v191 = vld [vmem:[%s189] sm:%s182]
              %192 = vst [vmem:[%s190] sm:%s182] %v191
            $region134: #{tpu_custom_call.1} parent=128 // loop_footer
              %s188 = sadd.s32 1, %s184
            $region135: #{tpu_custom_call.1} parent=128 // loop_footer_branch
              %183 = sbr.rel target = $region131
            $region136: #{tpu_custom_call.1} parent=128 // loop_exit
              _
          $region129: #{tpu_custom_call.1} parent=113 // pred_fallthru
            _
        $region114: #{tpu_custom_call.1} parent=17 // pred_fallthru
          _
        // Predicated region
        $region115: #{tpu_custom_call.1} parent=17 // pred_check
          _
        $region116: #{tpu_custom_call.1} parent=17 // pred_check_branch
          %166 = sbr.rel (0) target = $region118
        $region117: #{tpu_custom_call.1} parent=17 // pred_region
          %s168 = ssub.s32 2, 1
          loop: start=0, step=1, limit=1
          $region119: #{tpu_custom_call.1} parent=117 // loop_pre_header
            _
          $region120: #{tpu_custom_call.1} parent=117 // loop_header
            %s170 = sphi 0, %s174
            %p171 = scmp.ge.s32.totalorder %s170, 1
            %s175 = sphi %s161, %s161
            %s176 = sphi %s162, %s162
          $region121: #{tpu_custom_call.1} parent=117 // loop_header_branch
            %173 = sbr.rel (%p171) target = $region125
          $region122: #{tpu_custom_call.1} parent=117 // loop_body
            %v177 = vld [vmem:[%s175] sm:%s168]
            %178 = vst [vmem:[%s176] sm:%s168] %v177
          $region123: #{tpu_custom_call.1} parent=117 // loop_footer
            %s174 = sadd.s32 1, %s170
          $region124: #{tpu_custom_call.1} parent=117 // loop_footer_branch
            %169 = sbr.rel target = $region120
          $region125: #{tpu_custom_call.1} parent=117 // loop_exit
            _
        $region118: #{tpu_custom_call.1} parent=17 // pred_fallthru
          _
        // Predicated region
        $region137: #{tpu_custom_call.1} parent=17 // pred_check
          _
        $region138: #{tpu_custom_call.1} parent=17 // pred_check_branch
          %195 = sbr.rel (0) target = $region140
        $region139: #{tpu_custom_call.1} parent=17 // pred_region
          %196 = vsyncadd [#allocation3], 16
        $region140: #{tpu_custom_call.1} parent=17 // pred_fallthru
          _
        %s197 = sadd.s32 %s45, 4
        %s198 = sld [smem:[#allocation5 + %s197]]
        %s199 = scalar_lea.vmem [#allocation6], %s198
        %s200 = scalar_lea.vmem [#allocation2], %s197
        // Predicated region
        $region141: #{tpu_custom_call.1} parent=17 // pred_check
          _
        $region142: #{tpu_custom_call.1} parent=17 // pred_check_branch
          %202 = sbr.rel target = $region144
        $region143: #{tpu_custom_call.1} parent=17 // pred_region
          // Predicated region
          $region156: #{tpu_custom_call.1} parent=143 // pred_check
            _
          $region157: #{tpu_custom_call.1} parent=143 // pred_check_branch
            %218 = sbr.rel (0) target = $region159
          $region158: #{tpu_custom_call.1} parent=143 // pred_region
            %s220 = ssub.s32 2, 1
            loop: start=0, step=1, limit=1
            $region160: #{tpu_custom_call.1} parent=158 // loop_pre_header
              _
            $region161: #{tpu_custom_call.1} parent=158 // loop_header
              %s222 = sphi 0, %s226
              %p223 = scmp.ge.s32.totalorder %s222, 1
              %s227 = sphi %s199, %s199
              %s228 = sphi %s200, %s200
            $region162: #{tpu_custom_call.1} parent=158 // loop_header_branch
              %225 = sbr.rel (%p223) target = $region166
            $region163: #{tpu_custom_call.1} parent=158 // loop_body
              %v229 = vld [vmem:[%s227] sm:%s220]
              %230 = vst [vmem:[%s228] sm:%s220] %v229
            $region164: #{tpu_custom_call.1} parent=158 // loop_footer
              %s226 = sadd.s32 1, %s222
            $region165: #{tpu_custom_call.1} parent=158 // loop_footer_branch
              %221 = sbr.rel target = $region161
            $region166: #{tpu_custom_call.1} parent=158 // loop_exit
              _
          $region159: #{tpu_custom_call.1} parent=143 // pred_fallthru
            _
        $region144: #{tpu_custom_call.1} parent=17 // pred_fallthru
          _
        // Predicated region
        $region145: #{tpu_custom_call.1} parent=17 // pred_check
          _
        $region146: #{tpu_custom_call.1} parent=17 // pred_check_branch
          %204 = sbr.rel (0) target = $region148
        $region147: #{tpu_custom_call.1} parent=17 // pred_region
          %s206 = ssub.s32 2, 1
          loop: start=0, step=1, limit=1
          $region149: #{tpu_custom_call.1} parent=147 // loop_pre_header
            _
          $region150: #{tpu_custom_call.1} parent=147 // loop_header
            %s208 = sphi 0, %s212
            %p209 = scmp.ge.s32.totalorder %s208, 1
            %s213 = sphi %s199, %s199
            %s214 = sphi %s200, %s200
          $region151: #{tpu_custom_call.1} parent=147 // loop_header_branch
            %211 = sbr.rel (%p209) target = $region155
          $region152: #{tpu_custom_call.1} parent=147 // loop_body
            %v215 = vld [vmem:[%s213] sm:%s206]
            %216 = vst [vmem:[%s214] sm:%s206] %v215
          $region153: #{tpu_custom_call.1} parent=147 // loop_footer
            %s212 = sadd.s32 1, %s208
          $region154: #{tpu_custom_call.1} parent=147 // loop_footer_branch
            %207 = sbr.rel target = $region150
          $region155: #{tpu_custom_call.1} parent=147 // loop_exit
            _
        $region148: #{tpu_custom_call.1} parent=17 // pred_fallthru
          _
        // Predicated region
        $region167: #{tpu_custom_call.1} parent=17 // pred_check
          _
        $region168: #{tpu_custom_call.1} parent=17 // pred_check_branch
          %233 = sbr.rel (0) target = $region170
        $region169: #{tpu_custom_call.1} parent=17 // pred_region
          %234 = vsyncadd [#allocation3], 16
        $region170: #{tpu_custom_call.1} parent=17 // pred_fallthru
          _
        %s235 = sadd.s32 %s45, 5
        %s236 = sld [smem:[#allocation5 + %s235]]
        %s237 = scalar_lea.vmem [#allocation6], %s236
        %s238 = scalar_lea.vmem [#allocation2], %s235
        // Predicated region
        $region171: #{tpu_custom_call.1} parent=17 // pred_check
          _
        $region172: #{tpu_custom_call.1} parent=17 // pred_check_branch
          %240 = sbr.rel target = $region174
        $region173: #{tpu_custom_call.1} parent=17 // pred_region
          // Predicated region
          $region186: #{tpu_custom_call.1} parent=173 // pred_check
            _
          $region187: #{tpu_custom_call.1} parent=173 // pred_check_branch
            %256 = sbr.rel (0) target = $region189
          $region188: #{tpu_custom_call.1} parent=173 // pred_region
            %s258 = ssub.s32 2, 1
            loop: start=0, step=1, limit=1
            $region190: #{tpu_custom_call.1} parent=188 // loop_pre_header
              _
            $region191: #{tpu_custom_call.1} parent=188 // loop_header
              %s260 = sphi 0, %s264
              %p261 = scmp.ge.s32.totalorder %s260, 1
              %s265 = sphi %s237, %s237
              %s266 = sphi %s238, %s238
            $region192: #{tpu_custom_call.1} parent=188 // loop_header_branch
              %263 = sbr.rel (%p261) target = $region196
            $region193: #{tpu_custom_call.1} parent=188 // loop_body
              %v267 = vld [vmem:[%s265] sm:%s258]
              %268 = vst [vmem:[%s266] sm:%s258] %v267
            $region194: #{tpu_custom_call.1} parent=188 // loop_footer
              %s264 = sadd.s32 1, %s260
            $region195: #{tpu_custom_call.1} parent=188 // loop_footer_branch
              %259 = sbr.rel target = $region191
            $region196: #{tpu_custom_call.1} parent=188 // loop_exit
              _
          $region189: #{tpu_custom_call.1} parent=173 // pred_fallthru
            _
        $region174: #{tpu_custom_call.1} parent=17 // pred_fallthru
          _
        // Predicated region
        $region175: #{tpu_custom_call.1} parent=17 // pred_check
          _
        $region176: #{tpu_custom_call.1} parent=17 // pred_check_branch
          %242 = sbr.rel (0) target = $region178
        $region177: #{tpu_custom_call.1} parent=17 // pred_region
          %s244 = ssub.s32 2, 1
          loop: start=0, step=1, limit=1
          $region179: #{tpu_custom_call.1} parent=177 // loop_pre_header
            _
          $region180: #{tpu_custom_call.1} parent=177 // loop_header
            %s246 = sphi 0, %s250
            %p247 = scmp.ge.s32.totalorder %s246, 1
            %s251 = sphi %s237, %s237
            %s252 = sphi %s238, %s238
          $region181: #{tpu_custom_call.1} parent=177 // loop_header_branch
            %249 = sbr.rel (%p247) target = $region185
          $region182: #{tpu_custom_call.1} parent=177 // loop_body
            %v253 = vld [vmem:[%s251] sm:%s244]
            %254 = vst [vmem:[%s252] sm:%s244] %v253
          $region183: #{tpu_custom_call.1} parent=177 // loop_footer
            %s250 = sadd.s32 1, %s246
          $region184: #{tpu_custom_call.1} parent=177 // loop_footer_branch
            %245 = sbr.rel target = $region180
          $region185: #{tpu_custom_call.1} parent=177 // loop_exit
            _
        $region178: #{tpu_custom_call.1} parent=17 // pred_fallthru
          _
        // Predicated region
        $region197: #{tpu_custom_call.1} parent=17 // pred_check
          _
        $region198: #{tpu_custom_call.1} parent=17 // pred_check_branch
          %271 = sbr.rel (0) target = $region200
        $region199: #{tpu_custom_call.1} parent=17 // pred_region
          %272 = vsyncadd [#allocation3], 16
        $region200: #{tpu_custom_call.1} parent=17 // pred_fallthru
          _
        %s273 = sadd.s32 %s45, 6
        %s274 = sld [smem:[#allocation5 + %s273]]
        %s275 = scalar_lea.vmem [#allocation6], %s274
        %s276 = scalar_lea.vmem [#allocation2], %s273
        // Predicated region
        $region201: #{tpu_custom_call.1} parent=17 // pred_check
          _
        $region202: #{tpu_custom_call.1} parent=17 // pred_check_branch
          %278 = sbr.rel target = $region204
        $region203: #{tpu_custom_call.1} parent=17 // pred_region
          // Predicated region
          $region216: #{tpu_custom_call.1} parent=203 // pred_check
            _
          $region217: #{tpu_custom_call.1} parent=203 // pred_check_branch
            %294 = sbr.rel (0) target = $region219
          $region218: #{tpu_custom_call.1} parent=203 // pred_region
            %s296 = ssub.s32 2, 1
            loop: start=0, step=1, limit=1
            $region220: #{tpu_custom_call.1} parent=218 // loop_pre_header
              _
            $region221: #{tpu_custom_call.1} parent=218 // loop_header
              %s298 = sphi 0, %s302
              %p299 = scmp.ge.s32.totalorder %s298, 1
              %s303 = sphi %s275, %s275
              %s304 = sphi %s276, %s276
            $region222: #{tpu_custom_call.1} parent=218 // loop_header_branch
              %301 = sbr.rel (%p299) target = $region226
            $region223: #{tpu_custom_call.1} parent=218 // loop_body
              %v305 = vld [vmem:[%s303] sm:%s296]
              %306 = vst [vmem:[%s304] sm:%s296] %v305
            $region224: #{tpu_custom_call.1} parent=218 // loop_footer
              %s302 = sadd.s32 1, %s298
            $region225: #{tpu_custom_call.1} parent=218 // loop_footer_branch
              %297 = sbr.rel target = $region221
            $region226: #{tpu_custom_call.1} parent=218 // loop_exit
              _
          $region219: #{tpu_custom_call.1} parent=203 // pred_fallthru
            _
        $region204: #{tpu_custom_call.1} parent=17 // pred_fallthru
          _
        // Predicated region
        $region205: #{tpu_custom_call.1} parent=17 // pred_check
          _
        $region206: #{tpu_custom_call.1} parent=17 // pred_check_branch
          %280 = sbr.rel (0) target = $region208
        $region207: #{tpu_custom_call.1} parent=17 // pred_region
          %s282 = ssub.s32 2, 1
          loop: start=0, step=1, limit=1
          $region209: #{tpu_custom_call.1} parent=207 // loop_pre_header
            _
          $region210: #{tpu_custom_call.1} parent=207 // loop_header
            %s284 = sphi 0, %s288
            %p285 = scmp.ge.s32.totalorder %s284, 1
            %s289 = sphi %s275, %s275
            %s290 = sphi %s276, %s276
          $region211: #{tpu_custom_call.1} parent=207 // loop_header_branch
            %287 = sbr.rel (%p285) target = $region215
          $region212: #{tpu_custom_call.1} parent=207 // loop_body
            %v291 = vld [vmem:[%s289] sm:%s282]
            %292 = vst [vmem:[%s290] sm:%s282] %v291
          $region213: #{tpu_custom_call.1} parent=207 // loop_footer
            %s288 = sadd.s32 1, %s284
          $region214: #{tpu_custom_call.1} parent=207 // loop_footer_branch
            %283 = sbr.rel target = $region210
          $region215: #{tpu_custom_call.1} parent=207 // loop_exit
            _
        $region208: #{tpu_custom_call.1} parent=17 // pred_fallthru
          _
        // Predicated region
        $region227: #{tpu_custom_call.1} parent=17 // pred_check
          _
        $region228: #{tpu_custom_call.1} parent=17 // pred_check_branch
          %309 = sbr.rel (0) target = $region230
        $region229: #{tpu_custom_call.1} parent=17 // pred_region
          %310 = vsyncadd [#allocation3], 16
        $region230: #{tpu_custom_call.1} parent=17 // pred_fallthru
          _
        %s311 = sadd.s32 %s45, 7
        %s312 = sld [smem:[#allocation5 + %s311]]
        %s313 = scalar_lea.vmem [#allocation6], %s312
        %s314 = scalar_lea.vmem [#allocation2], %s311
        // Predicated region
        $region231: #{tpu_custom_call.1} parent=17 // pred_check
          _
        $region232: #{tpu_custom_call.1} parent=17 // pred_check_branch
          %316 = sbr.rel target = $region234
        $region233: #{tpu_custom_call.1} parent=17 // pred_region
          // Predicated region
          $region246: #{tpu_custom_call.1} parent=233 // pred_check
            _
          $region247: #{tpu_custom_call.1} parent=233 // pred_check_branch
            %332 = sbr.rel (0) target = $region249
          $region248: #{tpu_custom_call.1} parent=233 // pred_region
            %s334 = ssub.s32 2, 1
            loop: start=0, step=1, limit=1
            $region250: #{tpu_custom_call.1} parent=248 // loop_pre_header
              _
            $region251: #{tpu_custom_call.1} parent=248 // loop_header
              %s336 = sphi 0, %s340
              %p337 = scmp.ge.s32.totalorder %s336, 1
              %s341 = sphi %s313, %s313
              %s342 = sphi %s314, %s314
            $region252: #{tpu_custom_call.1} parent=248 // loop_header_branch
              %339 = sbr.rel (%p337) target = $region256
            $region253: #{tpu_custom_call.1} parent=248 // loop_body
              %v343 = vld [vmem:[%s341] sm:%s334]
              %344 = vst [vmem:[%s342] sm:%s334] %v343
            $region254: #{tpu_custom_call.1} parent=248 // loop_footer
              %s340 = sadd.s32 1, %s336
            $region255: #{tpu_custom_call.1} parent=248 // loop_footer_branch
              %335 = sbr.rel target = $region251
            $region256: #{tpu_custom_call.1} parent=248 // loop_exit
              _
          $region249: #{tpu_custom_call.1} parent=233 // pred_fallthru
            _
        $region234: #{tpu_custom_call.1} parent=17 // pred_fallthru
          _
        // Predicated region
        $region235: #{tpu_custom_call.1} parent=17 // pred_check
          _
        $region236: #{tpu_custom_call.1} parent=17 // pred_check_branch
          %318 = sbr.rel (0) target = $region238
        $region237: #{tpu_custom_call.1} parent=17 // pred_region
          %s320 = ssub.s32 2, 1
          loop: start=0, step=1, limit=1
          $region239: #{tpu_custom_call.1} parent=237 // loop_pre_header
            _
          $region240: #{tpu_custom_call.1} parent=237 // loop_header
            %s322 = sphi 0, %s326
            %p323 = scmp.ge.s32.totalorder %s322, 1
            %s327 = sphi %s313, %s313
            %s328 = sphi %s314, %s314
          $region241: #{tpu_custom_call.1} parent=237 // loop_header_branch
            %325 = sbr.rel (%p323) target = $region245
          $region242: #{tpu_custom_call.1} parent=237 // loop_body
            %v329 = vld [vmem:[%s327] sm:%s320]
            %330 = vst [vmem:[%s328] sm:%s320] %v329
          $region243: #{tpu_custom_call.1} parent=237 // loop_footer
            %s326 = sadd.s32 1, %s322
          $region244: #{tpu_custom_call.1} parent=237 // loop_footer_branch
            %321 = sbr.rel target = $region240
          $region245: #{tpu_custom_call.1} parent=237 // loop_exit
            _
        $region238: #{tpu_custom_call.1} parent=17 // pred_fallthru
          _
        // Predicated region
        $region257: #{tpu_custom_call.1} parent=17 // pred_check
          _
        $region258: #{tpu_custom_call.1} parent=17 // pred_check_branch
          %347 = sbr.rel (0) target = $region260
        $region259: #{tpu_custom_call.1} parent=17 // pred_region
          %348 = vsyncadd [#allocation3], 16
        $region260: #{tpu_custom_call.1} parent=17 // pred_fallthru
          _
      $region18: #{tpu_custom_call.1} parent=12 // loop_footer
        %s44 = sadd.s32 1, %s40
      $region19: #{tpu_custom_call.1} parent=12 // loop_footer_branch
        %39 = sbr.rel target = $region15
      $region20: #{tpu_custom_call.1} parent=12 // loop_exit
        _
    $region13: #{tpu_custom_call.1} parent=1 // pred_fallthru
      _
    %s349 = sadd.s32 0, 1
    %p350 = scmp.lt.s32.totalorder %s349, 1
    // Predicated region
    $region261: #{tpu_custom_call.1} parent=1 // pred_check
      %p351 = pneg %p350
    $region262: #{tpu_custom_call.1} parent=1 // pred_check_branch
      %353 = sbr.rel (%p351) target = $region264
    $region263: #{tpu_custom_call.1} parent=1 // pred_region
      %s354 = ssub.s32 1, %s34
      %s355 = smul.u32 %s349, 16
      loop: start=0, step=1, limit=2
      $region265: #{tpu_custom_call.1} parent=263 // loop_pre_header
        _
      $region266: #{tpu_custom_call.1} parent=263 // loop_header
        %s357 = sphi 0, %s361
        %p358 = scmp.ge.s32.totalorder %s357, 2
      $region267: #{tpu_custom_call.1} parent=263 // loop_header_branch
        %360 = sbr.rel (%p358) target = $region271
      $region268: #{tpu_custom_call.1} parent=263 // loop_body
        %s362 = smul.u32 %s357, 8
        %s363 = sadd.s32 %s355, %s362
        %s364 = sld [smem:[#allocation5 + %s363]]
        %s365 = scalar_lea.vmem [#allocation6], %s364
        %s366 = smul.u32 %s354, 16
        %s367 = sadd.s32 %s362, %s366
        %s368 = scalar_lea.vmem [#allocation2], %s367
        %s369 = scalar_lea.sflag [#allocation3], %s354
        // Predicated region
        $region272: #{tpu_custom_call.1} parent=268 // pred_check
          _
        $region273: #{tpu_custom_call.1} parent=268 // pred_check_branch
          %371 = sbr.rel target = $region275
        $region274: #{tpu_custom_call.1} parent=268 // pred_region
          // Predicated region
          $region287: #{tpu_custom_call.1} parent=274 // pred_check
            _
          $region288: #{tpu_custom_call.1} parent=274 // pred_check_branch
            %387 = sbr.rel (0) target = $region290
          $region289: #{tpu_custom_call.1} parent=274 // pred_region
            %s389 = ssub.s32 2, 1
            loop: start=0, step=1, limit=1
            $region291: #{tpu_custom_call.1} parent=289 // loop_pre_header
              _
            $region292: #{tpu_custom_call.1} parent=289 // loop_header
              %s391 = sphi 0, %s395
              %p392 = scmp.ge.s32.totalorder %s391, 1
              %s396 = sphi %s365, %s365
              %s397 = sphi %s368, %s368
            $region293: #{tpu_custom_call.1} parent=289 // loop_header_branch
              %394 = sbr.rel (%p392) target = $region297
            $region294: #{tpu_custom_call.1} parent=289 // loop_body
              %v398 = vld [vmem:[%s396] sm:%s389]
              %399 = vst [vmem:[%s397] sm:%s389] %v398
            $region295: #{tpu_custom_call.1} parent=289 // loop_footer
              %s395 = sadd.s32 1, %s391
            $region296: #{tpu_custom_call.1} parent=289 // loop_footer_branch
              %390 = sbr.rel target = $region292
            $region297: #{tpu_custom_call.1} parent=289 // loop_exit
              _
          $region290: #{tpu_custom_call.1} parent=274 // pred_fallthru
            _
        $region275: #{tpu_custom_call.1} parent=268 // pred_fallthru
          _
        // Predicated region
        $region276: #{tpu_custom_call.1} parent=268 // pred_check
          _
        $region277: #{tpu_custom_call.1} parent=268 // pred_check_branch
          %373 = sbr.rel (0) target = $region279
        $region278: #{tpu_custom_call.1} parent=268 // pred_region
          %s375 = ssub.s32 2, 1
          loop: start=0, step=1, limit=1
          $region280: #{tpu_custom_call.1} parent=278 // loop_pre_header
            _
          $region281: #{tpu_custom_call.1} parent=278 // loop_header
            %s377 = sphi 0, %s381
            %p378 = scmp.ge.s32.totalorder %s377, 1
            %s382 = sphi %s365, %s365
            %s383 = sphi %s368, %s368
          $region282: #{tpu_custom_call.1} parent=278 // loop_header_branch
            %380 = sbr.rel (%p378) target = $region286
          $region283: #{tpu_custom_call.1} parent=278 // loop_body
            %v384 = vld [vmem:[%s382] sm:%s375]
            %385 = vst [vmem:[%s383] sm:%s375] %v384
          $region284: #{tpu_custom_call.1} parent=278 // loop_footer
            %s381 = sadd.s32 1, %s377
          $region285: #{tpu_custom_call.1} parent=278 // loop_footer_branch
            %376 = sbr.rel target = $region281
          $region286: #{tpu_custom_call.1} parent=278 // loop_exit
            _
        $region279: #{tpu_custom_call.1} parent=268 // pred_fallthru
          _
        // Predicated region
        $region298: #{tpu_custom_call.1} parent=268 // pred_check
          _
        $region299: #{tpu_custom_call.1} parent=268 // pred_check_branch
          %402 = sbr.rel (0) target = $region301
        $region300: #{tpu_custom_call.1} parent=268 // pred_region
          %403 = vsyncadd %s369, 16
        $region301: #{tpu_custom_call.1} parent=268 // pred_fallthru
          _
        %s404 = sadd.s32 %s362, 1
        %s405 = sadd.s32 %s355, %s404
        %s406 = sld [smem:[#allocation5 + %s405]]
        %s407 = scalar_lea.vmem [#allocation6], %s406
        %s408 = sadd.s32 %s404, %s366
        %s409 = scalar_lea.vmem [#allocation2], %s408
        // Predicated region
        $region302: #{tpu_custom_call.1} parent=268 // pred_check
          _
        $region303: #{tpu_custom_call.1} parent=268 // pred_check_branch
          %411 = sbr.rel target = $region305
        $region304: #{tpu_custom_call.1} parent=268 // pred_region
          // Predicated region
          $region317: #{tpu_custom_call.1} parent=304 // pred_check
            _
          $region318: #{tpu_custom_call.1} parent=304 // pred_check_branch
            %427 = sbr.rel (0) target = $region320
          $region319: #{tpu_custom_call.1} parent=304 // pred_region
            %s429 = ssub.s32 2, 1
            loop: start=0, step=1, limit=1
            $region321: #{tpu_custom_call.1} parent=319 // loop_pre_header
              _
            $region322: #{tpu_custom_call.1} parent=319 // loop_header
              %s431 = sphi 0, %s435
              %p432 = scmp.ge.s32.totalorder %s431, 1
              %s436 = sphi %s407, %s407
              %s437 = sphi %s409, %s409
            $region323: #{tpu_custom_call.1} parent=319 // loop_header_branch
              %434 = sbr.rel (%p432) target = $region327
            $region324: #{tpu_custom_call.1} parent=319 // loop_body
              %v438 = vld [vmem:[%s436] sm:%s429]
              %439 = vst [vmem:[%s437] sm:%s429] %v438
            $region325: #{tpu_custom_call.1} parent=319 // loop_footer
              %s435 = sadd.s32 1, %s431
            $region326: #{tpu_custom_call.1} parent=319 // loop_footer_branch
              %430 = sbr.rel target = $region322
            $region327: #{tpu_custom_call.1} parent=319 // loop_exit
              _
          $region320: #{tpu_custom_call.1} parent=304 // pred_fallthru
            _
        $region305: #{tpu_custom_call.1} parent=268 // pred_fallthru
          _
        // Predicated region
        $region306: #{tpu_custom_call.1} parent=268 // pred_check
          _
        $region307: #{tpu_custom_call.1} parent=268 // pred_check_branch
          %413 = sbr.rel (0) target = $region309
        $region308: #{tpu_custom_call.1} parent=268 // pred_region
          %s415 = ssub.s32 2, 1
          loop: start=0, step=1, limit=1
          $region310: #{tpu_custom_call.1} parent=308 // loop_pre_header
            _
          $region311: #{tpu_custom_call.1} parent=308 // loop_header
            %s417 = sphi 0, %s421
            %p418 = scmp.ge.s32.totalorder %s417, 1
            %s422 = sphi %s407, %s407
            %s423 = sphi %s409, %s409
          $region312: #{tpu_custom_call.1} parent=308 // loop_header_branch
            %420 = sbr.rel (%p418) target = $region316
          $region313: #{tpu_custom_call.1} parent=308 // loop_body
            %v424 = vld [vmem:[%s422] sm:%s415]
            %425 = vst [vmem:[%s423] sm:%s415] %v424
          $region314: #{tpu_custom_call.1} parent=308 // loop_footer
            %s421 = sadd.s32 1, %s417
          $region315: #{tpu_custom_call.1} parent=308 // loop_footer_branch
            %416 = sbr.rel target = $region311
          $region316: #{tpu_custom_call.1} parent=308 // loop_exit
            _
        $region309: #{tpu_custom_call.1} parent=268 // pred_fallthru
          _
        // Predicated region
        $region328: #{tpu_custom_call.1} parent=268 // pred_check
          _
        $region329: #{tpu_custom_call.1} parent=268 // pred_check_branch
          %442 = sbr.rel (0) target = $region331
        $region330: #{tpu_custom_call.1} parent=268 // pred_region
          %443 = vsyncadd %s369, 16
        $region331: #{tpu_custom_call.1} parent=268 // pred_fallthru
          _
        %s444 = sadd.s32 %s362, 2
        %s445 = sadd.s32 %s355, %s444
        %s446 = sld [smem:[#allocation5 + %s445]]
        %s447 = scalar_lea.vmem [#allocation6], %s446
        %s448 = sadd.s32 %s444, %s366
        %s449 = scalar_lea.vmem [#allocation2], %s448
        // Predicated region
        $region332: #{tpu_custom_call.1} parent=268 // pred_check
          _
        $region333: #{tpu_custom_call.1} parent=268 // pred_check_branch
          %451 = sbr.rel target = $region335
        $region334: #{tpu_custom_call.1} parent=268 // pred_region
          // Predicated region
          $region347: #{tpu_custom_call.1} parent=334 // pred_check
            _
          $region348: #{tpu_custom_call.1} parent=334 // pred_check_branch
            %467 = sbr.rel (0) target = $region350
          $region349: #{tpu_custom_call.1} parent=334 // pred_region
            %s469 = ssub.s32 2, 1
            loop: start=0, step=1, limit=1
            $region351: #{tpu_custom_call.1} parent=349 // loop_pre_header
              _
            $region352: #{tpu_custom_call.1} parent=349 // loop_header
              %s471 = sphi 0, %s475
              %p472 = scmp.ge.s32.totalorder %s471, 1
              %s476 = sphi %s447, %s447
              %s477 = sphi %s449, %s449
            $region353: #{tpu_custom_call.1} parent=349 // loop_header_branch
              %474 = sbr.rel (%p472) target = $region357
            $region354: #{tpu_custom_call.1} parent=349 // loop_body
              %v478 = vld [vmem:[%s476] sm:%s469]
              %479 = vst [vmem:[%s477] sm:%s469] %v478
            $region355: #{tpu_custom_call.1} parent=349 // loop_footer
              %s475 = sadd.s32 1, %s471
            $region356: #{tpu_custom_call.1} parent=349 // loop_footer_branch
              %470 = sbr.rel target = $region352
            $region357: #{tpu_custom_call.1} parent=349 // loop_exit
              _
          $region350: #{tpu_custom_call.1} parent=334 // pred_fallthru
            _
        $region335: #{tpu_custom_call.1} parent=268 // pred_fallthru
          _
        // Predicated region
        $region336: #{tpu_custom_call.1} parent=268 // pred_check
          _
        $region337: #{tpu_custom_call.1} parent=268 // pred_check_branch
          %453 = sbr.rel (0) target = $region339
        $region338: #{tpu_custom_call.1} parent=268 // pred_region
          %s455 = ssub.s32 2, 1
          loop: start=0, step=1, limit=1
          $region340: #{tpu_custom_call.1} parent=338 // loop_pre_header
            _
          $region341: #{tpu_custom_call.1} parent=338 // loop_header
            %s457 = sphi 0, %s461
            %p458 = scmp.ge.s32.totalorder %s457, 1
            %s462 = sphi %s447, %s447
            %s463 = sphi %s449, %s449
          $region342: #{tpu_custom_call.1} parent=338 // loop_header_branch
            %460 = sbr.rel (%p458) target = $region346
          $region343: #{tpu_custom_call.1} parent=338 // loop_body
            %v464 = vld [vmem:[%s462] sm:%s455]
            %465 = vst [vmem:[%s463] sm:%s455] %v464
          $region344: #{tpu_custom_call.1} parent=338 // loop_footer
            %s461 = sadd.s32 1, %s457
          $region345: #{tpu_custom_call.1} parent=338 // loop_footer_branch
            %456 = sbr.rel target = $region341
          $region346: #{tpu_custom_call.1} parent=338 // loop_exit
            _
        $region339: #{tpu_custom_call.1} parent=268 // pred_fallthru
          _
        // Predicated region
        $region358: #{tpu_custom_call.1} parent=268 // pred_check
          _
        $region359: #{tpu_custom_call.1} parent=268 // pred_check_branch
          %482 = sbr.rel (0) target = $region361
        $region360: #{tpu_custom_call.1} parent=268 // pred_region
          %483 = vsyncadd %s369, 16
        $region361: #{tpu_custom_call.1} parent=268 // pred_fallthru
          _
        %s484 = sadd.s32 %s362, 3
        %s485 = sadd.s32 %s355, %s484
        %s486 = sld [smem:[#allocation5 + %s485]]
        %s487 = scalar_lea.vmem [#allocation6], %s486
        %s488 = sadd.s32 %s484, %s366
        %s489 = scalar_lea.vmem [#allocation2], %s488
        // Predicated region
        $region362: #{tpu_custom_call.1} parent=268 // pred_check
          _
        $region363: #{tpu_custom_call.1} parent=268 // pred_check_branch
          %491 = sbr.rel target = $region365
        $region364: #{tpu_custom_call.1} parent=268 // pred_region
          // Predicated region
          $region377: #{tpu_custom_call.1} parent=364 // pred_check
            _
          $region378: #{tpu_custom_call.1} parent=364 // pred_check_branch
            %507 = sbr.rel (0) target = $region380
          $region379: #{tpu_custom_call.1} parent=364 // pred_region
            %s509 = ssub.s32 2, 1
            loop: start=0, step=1, limit=1
            $region381: #{tpu_custom_call.1} parent=379 // loop_pre_header
              _
            $region382: #{tpu_custom_call.1} parent=379 // loop_header
              %s511 = sphi 0, %s515
              %p512 = scmp.ge.s32.totalorder %s511, 1
              %s516 = sphi %s487, %s487
              %s517 = sphi %s489, %s489
            $region383: #{tpu_custom_call.1} parent=379 // loop_header_branch
              %514 = sbr.rel (%p512) target = $region387
            $region384: #{tpu_custom_call.1} parent=379 // loop_body
              %v518 = vld [vmem:[%s516] sm:%s509]
              %519 = vst [vmem:[%s517] sm:%s509] %v518
            $region385: #{tpu_custom_call.1} parent=379 // loop_footer
              %s515 = sadd.s32 1, %s511
            $region386: #{tpu_custom_call.1} parent=379 // loop_footer_branch
              %510 = sbr.rel target = $region382
            $region387: #{tpu_custom_call.1} parent=379 // loop_exit
              _
          $region380: #{tpu_custom_call.1} parent=364 // pred_fallthru
            _
        $region365: #{tpu_custom_call.1} parent=268 // pred_fallthru
          _
        // Predicated region
        $region366: #{tpu_custom_call.1} parent=268 // pred_check
          _
        $region367: #{tpu_custom_call.1} parent=268 // pred_check_branch
          %493 = sbr.rel (0) target = $region369
        $region368: #{tpu_custom_call.1} parent=268 // pred_region
          %s495 = ssub.s32 2, 1
          loop: start=0, step=1, limit=1
          $region370: #{tpu_custom_call.1} parent=368 // loop_pre_header
            _
          $region371: #{tpu_custom_call.1} parent=368 // loop_header
            %s497 = sphi 0, %s501
            %p498 = scmp.ge.s32.totalorder %s497, 1
            %s502 = sphi %s487, %s487
            %s503 = sphi %s489, %s489
          $region372: #{tpu_custom_call.1} parent=368 // loop_header_branch
            %500 = sbr.rel (%p498) target = $region376
          $region373: #{tpu_custom_call.1} parent=368 // loop_body
            %v504 = vld [vmem:[%s502] sm:%s495]
            %505 = vst [vmem:[%s503] sm:%s495] %v504
          $region374: #{tpu_custom_call.1} parent=368 // loop_footer
            %s501 = sadd.s32 1, %s497
          $region375: #{tpu_custom_call.1} parent=368 // loop_footer_branch
            %496 = sbr.rel target = $region371
          $region376: #{tpu_custom_call.1} parent=368 // loop_exit
            _
        $region369: #{tpu_custom_call.1} parent=268 // pred_fallthru
          _
        // Predicated region
        $region388: #{tpu_custom_call.1} parent=268 // pred_check
          _
        $region389: #{tpu_custom_call.1} parent=268 // pred_check_branch
          %522 = sbr.rel (0) target = $region391
        $region390: #{tpu_custom_call.1} parent=268 // pred_region
          %523 = vsyncadd %s369, 16
        $region391: #{tpu_custom_call.1} parent=268 // pred_fallthru
          _
        %s524 = sadd.s32 %s362, 4
        %s525 = sadd.s32 %s355, %s524
        %s526 = sld [smem:[#allocation5 + %s525]]
        %s527 = scalar_lea.vmem [#allocation6], %s526
        %s528 = sadd.s32 %s524, %s366
        %s529 = scalar_lea.vmem [#allocation2], %s528
        // Predicated region
        $region392: #{tpu_custom_call.1} parent=268 // pred_check
          _
        $region393: #{tpu_custom_call.1} parent=268 // pred_check_branch
          %531 = sbr.rel target = $region395
        $region394: #{tpu_custom_call.1} parent=268 // pred_region
          // Predicated region
          $region407: #{tpu_custom_call.1} parent=394 // pred_check
            _
          $region408: #{tpu_custom_call.1} parent=394 // pred_check_branch
            %547 = sbr.rel (0) target = $region410
          $region409: #{tpu_custom_call.1} parent=394 // pred_region
            %s549 = ssub.s32 2, 1
            loop: start=0, step=1, limit=1
            $region411: #{tpu_custom_call.1} parent=409 // loop_pre_header
              _
            $region412: #{tpu_custom_call.1} parent=409 // loop_header
              %s551 = sphi 0, %s555
              %p552 = scmp.ge.s32.totalorder %s551, 1
              %s556 = sphi %s527, %s527
              %s557 = sphi %s529, %s529
            $region413: #{tpu_custom_call.1} parent=409 // loop_header_branch
              %554 = sbr.rel (%p552) target = $region417
            $region414: #{tpu_custom_call.1} parent=409 // loop_body
              %v558 = vld [vmem:[%s556] sm:%s549]
              %559 = vst [vmem:[%s557] sm:%s549] %v558
            $region415: #{tpu_custom_call.1} parent=409 // loop_footer
              %s555 = sadd.s32 1, %s551
            $region416: #{tpu_custom_call.1} parent=409 // loop_footer_branch
              %550 = sbr.rel target = $region412
            $region417: #{tpu_custom_call.1} parent=409 // loop_exit
              _
          $region410: #{tpu_custom_call.1} parent=394 // pred_fallthru
            _
        $region395: #{tpu_custom_call.1} parent=268 // pred_fallthru
          _
        // Predicated region
        $region396: #{tpu_custom_call.1} parent=268 // pred_check
          _
        $region397: #{tpu_custom_call.1} parent=268 // pred_check_branch
          %533 = sbr.rel (0) target = $region399
        $region398: #{tpu_custom_call.1} parent=268 // pred_region
          %s535 = ssub.s32 2, 1
          loop: start=0, step=1, limit=1
          $region400: #{tpu_custom_call.1} parent=398 // loop_pre_header
            _
          $region401: #{tpu_custom_call.1} parent=398 // loop_header
            %s537 = sphi 0, %s541
            %p538 = scmp.ge.s32.totalorder %s537, 1
            %s542 = sphi %s527, %s527
            %s543 = sphi %s529, %s529
          $region402: #{tpu_custom_call.1} parent=398 // loop_header_branch
            %540 = sbr.rel (%p538) target = $region406
          $region403: #{tpu_custom_call.1} parent=398 // loop_body
            %v544 = vld [vmem:[%s542] sm:%s535]
            %545 = vst [vmem:[%s543] sm:%s535] %v544
          $region404: #{tpu_custom_call.1} parent=398 // loop_footer
            %s541 = sadd.s32 1, %s537
          $region405: #{tpu_custom_call.1} parent=398 // loop_footer_branch
            %536 = sbr.rel target = $region401
          $region406: #{tpu_custom_call.1} parent=398 // loop_exit
            _
        $region399: #{tpu_custom_call.1} parent=268 // pred_fallthru
          _
        // Predicated region
        $region418: #{tpu_custom_call.1} parent=268 // pred_check
          _
        $region419: #{tpu_custom_call.1} parent=268 // pred_check_branch
          %562 = sbr.rel (0) target = $region421
        $region420: #{tpu_custom_call.1} parent=268 // pred_region
          %563 = vsyncadd %s369, 16
        $region421: #{tpu_custom_call.1} parent=268 // pred_fallthru
          _
        %s564 = sadd.s32 %s362, 5
        %s565 = sadd.s32 %s355, %s564
        %s566 = sld [smem:[#allocation5 + %s565]]
        %s567 = scalar_lea.vmem [#allocation6], %s566
        %s568 = sadd.s32 %s564, %s366
        %s569 = scalar_lea.vmem [#allocation2], %s568
        // Predicated region
        $region422: #{tpu_custom_call.1} parent=268 // pred_check
          _
        $region423: #{tpu_custom_call.1} parent=268 // pred_check_branch
          %571 = sbr.rel target = $region425
        $region424: #{tpu_custom_call.1} parent=268 // pred_region
          // Predicated region
          $region437: #{tpu_custom_call.1} parent=424 // pred_check
            _
          $region438: #{tpu_custom_call.1} parent=424 // pred_check_branch
            %587 = sbr.rel (0) target = $region440
          $region439: #{tpu_custom_call.1} parent=424 // pred_region
            %s589 = ssub.s32 2, 1
            loop: start=0, step=1, limit=1
            $region441: #{tpu_custom_call.1} parent=439 // loop_pre_header
              _
            $region442: #{tpu_custom_call.1} parent=439 // loop_header
              %s591 = sphi 0, %s595
              %p592 = scmp.ge.s32.totalorder %s591, 1
              %s596 = sphi %s567, %s567
              %s597 = sphi %s569, %s569
            $region443: #{tpu_custom_call.1} parent=439 // loop_header_branch
              %594 = sbr.rel (%p592) target = $region447
            $region444: #{tpu_custom_call.1} parent=439 // loop_body
              %v598 = vld [vmem:[%s596] sm:%s589]
              %599 = vst [vmem:[%s597] sm:%s589] %v598
            $region445: #{tpu_custom_call.1} parent=439 // loop_footer
              %s595 = sadd.s32 1, %s591
            $region446: #{tpu_custom_call.1} parent=439 // loop_footer_branch
              %590 = sbr.rel target = $region442
            $region447: #{tpu_custom_call.1} parent=439 // loop_exit
              _
          $region440: #{tpu_custom_call.1} parent=424 // pred_fallthru
            _
        $region425: #{tpu_custom_call.1} parent=268 // pred_fallthru
          _
        // Predicated region
        $region426: #{tpu_custom_call.1} parent=268 // pred_check
          _
        $region427: #{tpu_custom_call.1} parent=268 // pred_check_branch
          %573 = sbr.rel (0) target = $region429
        $region428: #{tpu_custom_call.1} parent=268 // pred_region
          %s575 = ssub.s32 2, 1
          loop: start=0, step=1, limit=1
          $region430: #{tpu_custom_call.1} parent=428 // loop_pre_header
            _
          $region431: #{tpu_custom_call.1} parent=428 // loop_header
            %s577 = sphi 0, %s581
            %p578 = scmp.ge.s32.totalorder %s577, 1
            %s582 = sphi %s567, %s567
            %s583 = sphi %s569, %s569
          $region432: #{tpu_custom_call.1} parent=428 // loop_header_branch
            %580 = sbr.rel (%p578) target = $region436
          $region433: #{tpu_custom_call.1} parent=428 // loop_body
            %v584 = vld [vmem:[%s582] sm:%s575]
            %585 = vst [vmem:[%s583] sm:%s575] %v584
          $region434: #{tpu_custom_call.1} parent=428 // loop_footer
            %s581 = sadd.s32 1, %s577
          $region435: #{tpu_custom_call.1} parent=428 // loop_footer_branch
            %576 = sbr.rel target = $region431
          $region436: #{tpu_custom_call.1} parent=428 // loop_exit
            _
        $region429: #{tpu_custom_call.1} parent=268 // pred_fallthru
          _
        // Predicated region
        $region448: #{tpu_custom_call.1} parent=268 // pred_check
          _
        $region449: #{tpu_custom_call.1} parent=268 // pred_check_branch
          %602 = sbr.rel (0) target = $region451
        $region450: #{tpu_custom_call.1} parent=268 // pred_region
          %603 = vsyncadd %s369, 16
        $region451: #{tpu_custom_call.1} parent=268 // pred_fallthru
          _
        %s604 = sadd.s32 %s362, 6
        %s605 = sadd.s32 %s355, %s604
        %s606 = sld [smem:[#allocation5 + %s605]]
        %s607 = scalar_lea.vmem [#allocation6], %s606
        %s608 = sadd.s32 %s604, %s366
        %s609 = scalar_lea.vmem [#allocation2], %s608
        // Predicated region
        $region452: #{tpu_custom_call.1} parent=268 // pred_check
          _
        $region453: #{tpu_custom_call.1} parent=268 // pred_check_branch
          %611 = sbr.rel target = $region455
        $region454: #{tpu_custom_call.1} parent=268 // pred_region
          // Predicated region
          $region467: #{tpu_custom_call.1} parent=454 // pred_check
            _
          $region468: #{tpu_custom_call.1} parent=454 // pred_check_branch
            %627 = sbr.rel (0) target = $region470
          $region469: #{tpu_custom_call.1} parent=454 // pred_region
            %s629 = ssub.s32 2, 1
            loop: start=0, step=1, limit=1
            $region471: #{tpu_custom_call.1} parent=469 // loop_pre_header
              _
            $region472: #{tpu_custom_call.1} parent=469 // loop_header
              %s631 = sphi 0, %s635
              %p632 = scmp.ge.s32.totalorder %s631, 1
              %s636 = sphi %s607, %s607
              %s637 = sphi %s609, %s609
            $region473: #{tpu_custom_call.1} parent=469 // loop_header_branch
              %634 = sbr.rel (%p632) target = $region477
            $region474: #{tpu_custom_call.1} parent=469 // loop_body
              %v638 = vld [vmem:[%s636] sm:%s629]
              %639 = vst [vmem:[%s637] sm:%s629] %v638
            $region475: #{tpu_custom_call.1} parent=469 // loop_footer
              %s635 = sadd.s32 1, %s631
            $region476: #{tpu_custom_call.1} parent=469 // loop_footer_branch
              %630 = sbr.rel target = $region472
            $region477: #{tpu_custom_call.1} parent=469 // loop_exit
              _
          $region470: #{tpu_custom_call.1} parent=454 // pred_fallthru
            _
        $region455: #{tpu_custom_call.1} parent=268 // pred_fallthru
          _
        // Predicated region
        $region456: #{tpu_custom_call.1} parent=268 // pred_check
          _
        $region457: #{tpu_custom_call.1} parent=268 // pred_check_branch
          %613 = sbr.rel (0) target = $region459
        $region458: #{tpu_custom_call.1} parent=268 // pred_region
          %s615 = ssub.s32 2, 1
          loop: start=0, step=1, limit=1
          $region460: #{tpu_custom_call.1} parent=458 // loop_pre_header
            _
          $region461: #{tpu_custom_call.1} parent=458 // loop_header
            %s617 = sphi 0, %s621
            %p618 = scmp.ge.s32.totalorder %s617, 1
            %s622 = sphi %s607, %s607
            %s623 = sphi %s609, %s609
          $region462: #{tpu_custom_call.1} parent=458 // loop_header_branch
            %620 = sbr.rel (%p618) target = $region466
          $region463: #{tpu_custom_call.1} parent=458 // loop_body
            %v624 = vld [vmem:[%s622] sm:%s615]
            %625 = vst [vmem:[%s623] sm:%s615] %v624
          $region464: #{tpu_custom_call.1} parent=458 // loop_footer
            %s621 = sadd.s32 1, %s617
          $region465: #{tpu_custom_call.1} parent=458 // loop_footer_branch
            %616 = sbr.rel target = $region461
          $region466: #{tpu_custom_call.1} parent=458 // loop_exit
            _
        $region459: #{tpu_custom_call.1} parent=268 // pred_fallthru
          _
        // Predicated region
        $region478: #{tpu_custom_call.1} parent=268 // pred_check
          _
        $region479: #{tpu_custom_call.1} parent=268 // pred_check_branch
          %642 = sbr.rel (0) target = $region481
        $region480: #{tpu_custom_call.1} parent=268 // pred_region
          %643 = vsyncadd %s369, 16
        $region481: #{tpu_custom_call.1} parent=268 // pred_fallthru
          _
        %s644 = sadd.s32 %s362, 7
        %s645 = sadd.s32 %s355, %s644
        %s646 = sld [smem:[#allocation5 + %s645]]
        %s647 = scalar_lea.vmem [#allocation6], %s646
        %s648 = sadd.s32 %s644, %s366
        %s649 = scalar_lea.vmem [#allocation2], %s648
        // Predicated region
        $region482: #{tpu_custom_call.1} parent=268 // pred_check
          _
        $region483: #{tpu_custom_call.1} parent=268 // pred_check_branch
          %651 = sbr.rel target = $region485
        $region484: #{tpu_custom_call.1} parent=268 // pred_region
          // Predicated region
          $region497: #{tpu_custom_call.1} parent=484 // pred_check
            _
          $region498: #{tpu_custom_call.1} parent=484 // pred_check_branch
            %667 = sbr.rel (0) target = $region500
          $region499: #{tpu_custom_call.1} parent=484 // pred_region
            %s669 = ssub.s32 2, 1
            loop: start=0, step=1, limit=1
            $region501: #{tpu_custom_call.1} parent=499 // loop_pre_header
              _
            $region502: #{tpu_custom_call.1} parent=499 // loop_header
              %s671 = sphi 0, %s675
              %p672 = scmp.ge.s32.totalorder %s671, 1
              %s676 = sphi %s647, %s647
              %s677 = sphi %s649, %s649
            $region503: #{tpu_custom_call.1} parent=499 // loop_header_branch
              %674 = sbr.rel (%p672) target = $region507
            $region504: #{tpu_custom_call.1} parent=499 // loop_body
              %v678 = vld [vmem:[%s676] sm:%s669]
              %679 = vst [vmem:[%s677] sm:%s669] %v678
            $region505: #{tpu_custom_call.1} parent=499 // loop_footer
              %s675 = sadd.s32 1, %s671
            $region506: #{tpu_custom_call.1} parent=499 // loop_footer_branch
              %670 = sbr.rel target = $region502
            $region507: #{tpu_custom_call.1} parent=499 // loop_exit
              _
          $region500: #{tpu_custom_call.1} parent=484 // pred_fallthru
            _
        $region485: #{tpu_custom_call.1} parent=268 // pred_fallthru
          _
        // Predicated region
        $region486: #{tpu_custom_call.1} parent=268 // pred_check
          _
        $region487: #{tpu_custom_call.1} parent=268 // pred_check_branch
          %653 = sbr.rel (0) target = $region489
        $region488: #{tpu_custom_call.1} parent=268 // pred_region
          %s655 = ssub.s32 2, 1
          loop: start=0, step=1, limit=1
          $region490: #{tpu_custom_call.1} parent=488 // loop_pre_header
            _
          $region491: #{tpu_custom_call.1} parent=488 // loop_header
            %s657 = sphi 0, %s661
            %p658 = scmp.ge.s32.totalorder %s657, 1
            %s662 = sphi %s647, %s647
            %s663 = sphi %s649, %s649
          $region492: #{tpu_custom_call.1} parent=488 // loop_header_branch
            %660 = sbr.rel (%p658) target = $region496
          $region493: #{tpu_custom_call.1} parent=488 // loop_body
            %v664 = vld [vmem:[%s662] sm:%s655]
            %665 = vst [vmem:[%s663] sm:%s655] %v664
          $region494: #{tpu_custom_call.1} parent=488 // loop_footer
            %s661 = sadd.s32 1, %s657
          $region495: #{tpu_custom_call.1} parent=488 // loop_footer_branch
            %656 = sbr.rel target = $region491
          $region496: #{tpu_custom_call.1} parent=488 // loop_exit
            _
        $region489: #{tpu_custom_call.1} parent=268 // pred_fallthru
          _
        // Predicated region
        $region508: #{tpu_custom_call.1} parent=268 // pred_check
          _
        $region509: #{tpu_custom_call.1} parent=268 // pred_check_branch
          %682 = sbr.rel (0) target = $region511
        $region510: #{tpu_custom_call.1} parent=268 // pred_region
          %683 = vsyncadd %s369, 16
        $region511: #{tpu_custom_call.1} parent=268 // pred_fallthru
          _
      $region269: #{tpu_custom_call.1} parent=263 // loop_footer
        %s361 = sadd.s32 1, %s357
      $region270: #{tpu_custom_call.1} parent=263 // loop_footer_branch
        %356 = sbr.rel target = $region266
      $region271: #{tpu_custom_call.1} parent=263 // loop_exit
        _
    $region264: #{tpu_custom_call.1} parent=1 // pred_fallthru
      _
    %s684 = smul.u32 %s34, 16
    %s685 = scalar_lea.vmem [#allocation2], %s684
    %s686 = scalar_lea.sflag [#allocation3], %s34
    %s687 = smul.u32 16, 1
    %s688 = sshll.u32 %s687, 4
    %689 = dma.done %s686, %s688
    %v690 = vld [vmem:[%s685] sm:$0xff]
    %v691 = vld [vmem:[%s685 + $0x8] sm:$0xff]
    %v692 = vmul.f32 %v690, 11.313708
    %v693 = vmul.f32 %v691, 11.313708
    %694 = vst [vmem:[#allocation9] sm:$0xff] %v692
    %695 = vst [vmem:[#allocation9 + $0x8] sm:$0xff] %v693
    // Predicated region
    $region512: #{tpu_custom_call.1} parent=1 // pred_check
      _
    $region513: #{tpu_custom_call.1} parent=1 // pred_check_branch
      %697 = sbr.rel (0) target = $region515
    $region514: #{tpu_custom_call.1} parent=1 // pred_region
      %699 = vsyncadd [#allocation8], 0
      %s700 = sshll.u32 [#allocation9], 4
      %s701 = int_to_ptr.vmem [resolvable:$true] %s700
      %s702 = sshll.u32 %s2, 4
      %s703 = int_to_ptr.hbm [resolvable:$true] %s702
      %708 = dma.vmem_to_hbm [thread:$0]  %s701, 256, %s703, [#allocation8], 128, 128, 8
    $region515: #{tpu_custom_call.1} parent=1 // pred_fallthru
      _
    // Predicated region
    $region516: #{tpu_custom_call.1} parent=1 // pred_check
      _
    $region517: #{tpu_custom_call.1} parent=1 // pred_check_branch
      %710 = sbr.rel (0) target = $region519
    $region518: #{tpu_custom_call.1} parent=1 // pred_region
      %712 = dma.done [#allocation8], 256
    $region519: #{tpu_custom_call.1} parent=1 // pred_fallthru
      _
    %713 = vsyncpa [#allocation7], 1
    %714 = vsyncpa [#allocation8], 1
  %715 = vsyncmov [#allocation3]
  %s716 = vpop.sfrf %715
  %p717 = scmp.eq.s32.totalorder %s716, 0
  %p718 = pneg %p717
  %720 = shalt.err (%p718)
  %s721 = scalar_lea.sflag [#allocation3], 1
  %722 = vsyncmov %s721
  %s723 = vpop.sfrf %722
  %p724 = scmp.eq.s32.totalorder %s723, 0
  %p725 = pneg %p724
  %727 = shalt.err (%p725)

</llo_original>
